<compile_context>
chip_gen: v7x
topology: tpu7x:2x2x1
jax: 0.10.0
libtpu: 0.0.40
codegen_flags: <defaults>
</compile_context>

<pallas_src>
import functools

import jax
import jax.numpy as jnp
import numpy as np
from jax import lax
from jax.experimental import pallas as pl
from jax.experimental.pallas import tpu as pltpu


def _gru_recurrent_kernel(gi_ref, h0_ref, whh_ref, bhn_ref,
                          out_ref, hN_ref, h_carry, *, ts):
    """GRU recurrence for one layer, TS timesteps per grid step.

    gi_ref : (3, TS, B, H) f32  precomputed input projections, gate-major:
             gate 0 = r-part (includes b_ir + b_hr)
             gate 1 = z-part (includes b_iz + b_hz)
             gate 2 = n-part (includes b_in)
    h0_ref : (B, H)  f32   initial hidden state
    whh_ref: (3, H, H) bf16 pre-transposed so  h @ whh_ref[g]  gives gate proj
    bhn_ref: (1, H)  f32   b_hn (must stay inside r * (.))
    out_ref: (TS, B, H) f32
    hN_ref : (B, H)  f32   final hidden state
    h_carry: (B, H)  f32   VMEM scratch carrying h across grid steps
    """
    t = pl.program_id(0)

    @pl.when(t == 0)
    def _():
        h_carry[...] = h0_ref[...]

    w_r = whh_ref[0]            # (H, H) bf16
    w_z = whh_ref[1]
    w_n = whh_ref[2]
    b_hn = bhn_ref[...]         # (1, H) f32

    def step(i, h):
        h_b = h.astype(jnp.bfloat16)
        # Hidden projections on the MXU (bf16 in, f32 accumulate).
        gr = gi_ref[0, i] + jnp.dot(h_b, w_r, preferred_element_type=jnp.float32)
        gz = gi_ref[1, i] + jnp.dot(h_b, w_z, preferred_element_type=jnp.float32)
        hn = jnp.dot(h_b, w_n, preferred_element_type=jnp.float32) + b_hn
        # Gate math in f32.
        r = jax.nn.sigmoid(gr)
        z = jax.nn.sigmoid(gz)
        n = jnp.tanh(gi_ref[2, i] + r * hn)
        h_new = (1.0 - z) * n + z * h
        out_ref[i] = h_new.astype(out_ref.dtype)
        return h_new

    # Unrolled inner loop over the time chunk; h stays in vregs.
    h_last = lax.fori_loop(0, ts, step, h_carry[...], unroll=True)
    h_carry[...] = h_last

    @pl.when(t == pl.num_programs(0) - 1)
    def _():
        hN_ref[...] = h_last.astype(hN_ref.dtype)


def _pick_time_chunk(seq_len):
    """Largest chunk (<=16) that divides the sequence length."""
    for ts in (16, 8, 4, 2):
        if seq_len % ts == 0:
            return ts
    return 1


def gru_layer_recurrence_pallas(gi, h0, w_hh_t, b_hn):
    """Run the recurrent part of one GRU layer.

    gi:     (3, S, B, H) f32  hoisted input projections (gate-major)
    h0:     (B, H)       f32
    w_hh_t: (3, H, H)    bf16 gate-major, pre-transposed hidden weights
    b_hn:   (1, H)       f32
    returns (out (S, B, H) f32, h_last (B, H) f32)
    """
    _, S, B, H = gi.shape
    ts = _pick_time_chunk(S)
    kernel = functools.partial(_gru_recurrent_kernel, ts=ts)

    # NOTE: for large H on v7x (64 MiB VMEM), single-buffer the constant-index
    # weight blocks / raise vmem_limit_bytes; unnecessary at these sizes.
    out, h_last = pl.pallas_call(
        kernel,
        out_shape=(
            jax.ShapeDtypeStruct((S, B, H), jnp.float32),
            jax.ShapeDtypeStruct((B, H), jnp.float32),
        ),
        grid_spec=pltpu.PrefetchScalarGridSpec(
            num_scalar_prefetch=0,
            grid=(S // ts,),
            in_specs=[
                pl.BlockSpec((3, ts, B, H), lambda t: (0, t, 0, 0)),  # gi chunk
                pl.BlockSpec((B, H), lambda t: (0, 0)),               # h0
                pl.BlockSpec((3, H, H), lambda t: (0, 0, 0)),         # W_hh (bf16)
                pl.BlockSpec((1, H), lambda t: (0, 0)),               # b_hn
            ],
            out_specs=[
                pl.BlockSpec((ts, B, H), lambda t: (t, 0, 0)),        # outputs
                pl.BlockSpec((B, H), lambda t: (0, 0)),               # final h
            ],
            scratch_shapes=[pltpu.VMEM((B, H), jnp.float32)],         # h carry
        ),
        compiler_params=pltpu.CompilerParams(
            dimension_semantics=("arbitrary",),   # time is sequential
        ),
    )(gi, h0, w_hh_t, b_hn)
    return out, h_last


class EncoderRNNPallas:
    """JAX/Pallas port of EncoderRNN: multi-layer batch_first GRU."""

    def __init__(self, input_size, hidden_size, num_grulstm_layers, key):
        self.input_size = input_size
        self.hidden_size = hidden_size
        self.num_layers = num_grulstm_layers
        self.params = []
        bound = 1.0 / np.sqrt(hidden_size)
        for layer in range(num_grulstm_layers):
            in_dim = input_size if layer == 0 else hidden_size
            key, k1, k2, k3, k4 = jax.random.split(key, 5)
            w_ih = jax.random.uniform(k1, (3 * hidden_size, in_dim),
                                      jnp.float32, -bound, bound)
            w_hh = jax.random.uniform(k2, (3 * hidden_size, hidden_size),
                                      jnp.float32, -bound, bound)
            b_ih = jax.random.uniform(k3, (3 * hidden_size,),
                                      jnp.float32, -bound, bound)
            b_hh = jax.random.uniform(k4, (3 * hidden_size,),
                                      jnp.float32, -bound, bound)
            self.params.append((w_ih, w_hh, b_ih, b_hh))

        # Kernel-ready layouts (done once).
        H = hidden_size
        self._kernel_params = []
        for (w_ih, w_hh, b_ih, b_hh) in self.params:
            # (3H, H) torch layout -> gate-major, pre-transposed (3, Hin, Hout),
            # bf16 for the MXU.
            w_hh_t = jnp.transpose(w_hh.reshape(3, H, H), (0, 2, 1)).astype(jnp.bfloat16)
            # Fold b_ih and the r/z parts of b_hh into the hoisted projection.
            b_fold = b_ih + jnp.concatenate(
                [b_hh[:2 * H], jnp.zeros((H,), jnp.float32)])
            b_hn = b_hh[2 * H:].reshape(1, H)
            self._kernel_params.append((w_ih, w_hh_t, b_fold, b_hn))

    def __call__(self, inp, hidden):
        """inp: (B, S, I), hidden: (L, B, H) -> (output (B, S, H), hidden (L, B, H))"""
        B, S, _ = inp.shape
        H = self.hidden_size
        x_tm = jnp.transpose(inp, (1, 0, 2)).astype(jnp.float32)  # (S, B, I)
        h_finals = []
        for layer in range(self.num_layers):
            w_ih, w_hh_t, b_fold, b_hn = self._kernel_params[layer]
            # Hoisted input projection: one big matmul over the whole sequence
            # (plain XLA, per review), with b_ih + b_hr/b_hz folded in.
            gi = jnp.einsum("sbi,gi->sbg", x_tm, w_ih) + b_fold      # (S, B, 3H)
            gi = jnp.transpose(gi.reshape(S, B, 3, H), (2, 0, 1, 3))  # (3, S, B, H)
            out_tm, h_last = gru_layer_recurrence_pallas(
                gi, hidden[layer].astype(jnp.float32), w_hh_t, b_hn)
            x_tm = out_tm                     # feed next layer
            h_finals.append(h_last)
        output = jnp.transpose(x_tm, (1, 0, 2))          # back to batch_first
        hidden_out = jnp.stack(h_finals, axis=0)         # (L, B, H)
        return output, hidden_out
        # TODO(synk): fuse all layers into one pallas_call (activations in VMEM)
        # to remove the per-layer HBM round trip for very long sequences.


def _gru_reference(inp, hidden, params):
    """Pure-JAX f32 reference (lax.scan) mirroring torch.nn.GRU."""
    x = jnp.transpose(inp, (1, 0, 2))  # (S, B, I)
    h_finals = []
    for layer, (w_ih, w_hh, b_ih, b_hh) in enumerate(params):
        H = w_hh.shape[1]

        def step(h, x_t):
            gi = x_t @ w_ih.T + b_ih
            gh = h @ w_hh.T + b_hh
            i_r, i_z, i_n = gi[:, :H], gi[:, H:2 * H], gi[:, 2 * H:]
            h_r, h_z, h_n = gh[:, :H], gh[:, H:2 * H], gh[:, 2 * H:]
            r = jax.nn.sigmoid(i_r + h_r)
            z = jax.nn.sigmoid(i_z + h_z)
            n = jnp.tanh(i_n + r * h_n)
            h_new = (1.0 - z) * n + z * h
            return h_new, h_new

        h_last, outs = lax.scan(step, hidden[layer], x)
        x = outs
        h_finals.append(h_last)
    return jnp.transpose(x, (1, 0, 2)), jnp.stack(h_finals, axis=0)


if __name__ == "__main__":
    batch, seq, input_size, hidden_size, num_layers = 2, 8, 4, 32, 2

    key = jax.random.PRNGKey(0)
    key, k_in, k_h, k_params = jax.random.split(key, 4)

    inp = jax.random.normal(k_in, (batch, seq, input_size), jnp.float32)
    h0 = jax.random.normal(k_h, (num_layers, batch, hidden_size), jnp.float32)

    model = EncoderRNNPallas(input_size, hidden_size, num_layers, k_params)

    output, hidden = model(inp, h0)
    output = jax.block_until_ready(output)
    hidden = jax.block_until_ready(hidden)

    # Correctness vs pure-f32 reference (bf16 hidden-matmul -> looser tolerance).
    ref_out, ref_hidden = _gru_reference(inp, h0, model.params)
    np.testing.assert_allclose(np.asarray(output), np.asarray(ref_out),
                               rtol=3e-2, atol=3e-2)
    np.testing.assert_allclose(np.asarray(hidden), np.asarray(ref_hidden),
                               rtol=3e-2, atol=3e-2)

    assert output.shape == (batch, seq, hidden_size)
    assert hidden.shape == (num_layers, batch, hidden_size)
    print("KERNEL_OK")
</pallas_src>

<mosaic_0001>
module attributes {stable_mosaic.version = 11 : i64} {
  func.func @_gru_recurrent_kernel(%arg0: i32, %arg1: memref<3x8x2x32xf32, #tpu.memory_space<vmem>>, %arg2: memref<2x32xf32, #tpu.memory_space<vmem>>, %arg3: memref<3x32x32xbf16, #tpu.memory_space<vmem>>, %arg4: memref<1x32xf32, #tpu.memory_space<vmem>>, %arg5: memref<8x2x32xf32, #tpu.memory_space<vmem>>, %arg6: memref<2x32xf32, #tpu.memory_space<vmem>>, %arg7: memref<2x32xf32, #tpu.memory_space<vmem>>) attributes {dimension_semantics = [#tpu.dimension_semantics<arbitrary>], iteration_bounds = array<i64: 1>, scalar_prefetch = 0 : i64, scratch_operands = 1 : i64, tpu.core_type = #tpu.core_type<tc>, window_params = [{transform_indices = @transform_0, window_bounds = array<i64: 3, 8, 2, 32>}, {pipeline_mode = #tpu.pipeline_mode<synchronous>, transform_indices = @transform_1, window_bounds = array<i64: 2, 32>}, {pipeline_mode = #tpu.pipeline_mode<synchronous>, transform_indices = @transform_2, window_bounds = array<i64: 3, 32, 32>}, {pipeline_mode = #tpu.pipeline_mode<synchronous>, transform_indices = @transform_3, window_bounds = array<i64: 1, 32>}, {transform_indices = @transform_4, window_bounds = array<i64: 8, 2, 32>}, {pipeline_mode = #tpu.pipeline_mode<synchronous>, transform_indices = @transform_5, window_bounds = array<i64: 2, 32>}]} {
    %c0_i32 = arith.constant 0 : i32
    %0 = arith.cmpi eq, %arg0, %c0_i32 : i32
    %1 = arith.extui %0 : i1 to i32
    %c0_i32_0 = arith.constant 0 : i32
    %2 = arith.cmpi ne, %1, %c0_i32_0 : i32
    scf.if %2 {
      %c0_151 = arith.constant 0 : index
      %c0_152 = arith.constant 0 : index
      %327 = vector.load %arg2[%c0_151, %c0_152] : memref<2x32xf32, #tpu.memory_space<vmem>>, vector<2x32xf32>
      %c0_153 = arith.constant 0 : index
      %c0_154 = arith.constant 0 : index
      %328 = vector.load %arg7[%c0_153, %c0_154] : memref<2x32xf32, #tpu.memory_space<vmem>>, vector<2x32xf32>
      tpu.vector_store %arg7[%c0_153, %c0_154], %327 {strides = array<i32>} : memref<2x32xf32, #tpu.memory_space<vmem>>, vector<2x32xf32>,
    } else {
    }
    %c0 = arith.constant 0 : index
    %c0_1 = arith.constant 0 : index
    %c0_2 = arith.constant 0 : index
    %3 = vector.load %arg3[%c0, %c0_1, %c0_2] : memref<3x32x32xbf16, #tpu.memory_space<vmem>>, vector<1x32x32xbf16>
    %4 = vector.shape_cast %3 : vector<1x32x32xbf16> to vector<32x32xbf16>
    %c1 = arith.constant 1 : index
    %c0_3 = arith.constant 0 : index
    %c0_4 = arith.constant 0 : index
    %5 = vector.load %arg3[%c1, %c0_3, %c0_4] : memref<3x32x32xbf16, #tpu.memory_space<vmem>>, vector<1x32x32xbf16>
    %6 = vector.shape_cast %5 : vector<1x32x32xbf16> to vector<32x32xbf16>
    %c2 = arith.constant 2 : index
    %c0_5 = arith.constant 0 : index
    %c0_6 = arith.constant 0 : index
    %7 = vector.load %arg3[%c2, %c0_5, %c0_6] : memref<3x32x32xbf16, #tpu.memory_space<vmem>>, vector<1x32x32xbf16>
    %8 = vector.shape_cast %7 : vector<1x32x32xbf16> to vector<32x32xbf16>
    %c0_7 = arith.constant 0 : index
    %c0_8 = arith.constant 0 : index
    %9 = vector.load %arg4[%c0_7, %c0_8] : memref<1x32xf32, #tpu.memory_space<vmem>>, vector<1x32xf32>
    %c0_9 = arith.constant 0 : index
    %c0_10 = arith.constant 0 : index
    %10 = vector.load %arg7[%c0_9, %c0_10] : memref<2x32xf32, #tpu.memory_space<vmem>>, vector<2x32xf32>
    %c0_i32_11 = arith.constant 0 : i32
    %11 = arith.truncf %10 : vector<2x32xf32> to vector<2x32xbf16>
    %c0_12 = arith.constant 0 : index
    %12 = arith.index_cast %c0_i32_11 : i32 to index
    %c0_13 = arith.constant 0 : index
    %c0_14 = arith.constant 0 : index
    %13 = vector.load %arg1[%c0_12, %12, %c0_13, %c0_14] : memref<3x8x2x32xf32, #tpu.memory_space<vmem>>, vector<1x1x2x32xf32>
    %14 = vector.shape_cast %13 : vector<1x1x2x32xf32> to vector<2x32xf32>
    %cst = arith.constant dense<0.000000e+00> : vector<2x32xf32>
    %15 = tpu.matmul %11, %4, %cst {dimension_numbers = #tpu.dot_dimension_numbers<[1], [0], [0], [1], [0, 0, 1, 1], [], []>} : vector<2x32xbf16>, vector<32x32xbf16>, vector<2x32xf32> -> vector<2x32xf32>
    %16 = arith.addf %14, %15 : vector<2x32xf32>
    %c1_15 = arith.constant 1 : index
    %17 = arith.index_cast %c0_i32_11 : i32 to index
    %c0_16 = arith.constant 0 : index
    %c0_17 = arith.constant 0 : index
    %18 = vector.load %arg1[%c1_15, %17, %c0_16, %c0_17] : memref<3x8x2x32xf32, #tpu.memory_space<vmem>>, vector<1x1x2x32xf32>
    %19 = vector.shape_cast %18 : vector<1x1x2x32xf32> to vector<2x32xf32>
    %cst_18 = arith.constant dense<0.000000e+00> : vector<2x32xf32>
    %20 = tpu.matmul %11, %6, %cst_18 {dimension_numbers = #tpu.dot_dimension_numbers<[1], [0], [0], [1], [0, 0, 1, 1], [], []>} : vector<2x32xbf16>, vector<32x32xbf16>, vector<2x32xf32> -> vector<2x32xf32>
    %21 = arith.addf %19, %20 : vector<2x32xf32>
    %cst_19 = arith.constant dense<0.000000e+00> : vector<2x32xf32>
    %22 = tpu.matmul %11, %8, %cst_19 {dimension_numbers = #tpu.dot_dimension_numbers<[1], [0], [0], [1], [0, 0, 1, 1], [], []>} : vector<2x32xbf16>, vector<32x32xbf16>, vector<2x32xf32> -> vector<2x32xf32>
    %23 = vector.broadcast %9 : vector<1x32xf32> to vector<2x32xf32>
    %24 = arith.addf %22, %23 : vector<2x32xf32>
    %25 = arith.negf %16 : vector<2x32xf32>
    %26 = math.exp %25 : vector<2x32xf32>
    %cst_20 = arith.constant 1.000000e+00 : f32
    %27 = vector.broadcast %cst_20 : f32 to vector<2x32xf32>
    %28 = arith.addf %27, %26 : vector<2x32xf32>
    %29 = arith.divf %27, %28 : vector<2x32xf32>
    %30 = arith.negf %21 : vector<2x32xf32>
    %31 = math.exp %30 : vector<2x32xf32>
    %cst_21 = arith.constant 1.000000e+00 : f32
    %32 = vector.broadcast %cst_21 : f32 to vector<2x32xf32>
    %33 = arith.addf %32, %31 : vector<2x32xf32>
    %34 = arith.divf %32, %33 : vector<2x32xf32>
    %c2_22 = arith.constant 2 : index
    %35 = arith.index_cast %c0_i32_11 : i32 to index
    %c0_23 = arith.constant 0 : index
    %c0_24 = arith.constant 0 : index
    %36 = vector.load %arg1[%c2_22, %35, %c0_23, %c0_24] : memref<3x8x2x32xf32, #tpu.memory_space<vmem>>, vector<1x1x2x32xf32>
    %37 = vector.shape_cast %36 : vector<1x1x2x32xf32> to vector<2x32xf32>
    %38 = arith.mulf %29, %24 : vector<2x32xf32>
    %39 = arith.addf %37, %38 : vector<2x32xf32>
    %40 = math.tanh %39 : vector<2x32xf32>
    %cst_25 = arith.constant 1.000000e+00 : f32
    %41 = vector.broadcast %cst_25 : f32 to vector<2x32xf32>
    %42 = arith.subf %41, %34 : vector<2x32xf32>
    %43 = arith.mulf %42, %40 : vector<2x32xf32>
    %44 = arith.mulf %34, %10 : vector<2x32xf32>
    %45 = arith.addf %43, %44 : vector<2x32xf32>
    %46 = arith.index_cast %c0_i32_11 : i32 to index
    %c0_26 = arith.constant 0 : index
    %c0_27 = arith.constant 0 : index
    %47 = vector.load %arg5[%46, %c0_26, %c0_27] : memref<8x2x32xf32, #tpu.memory_space<vmem>>, vector<1x2x32xf32>
    %48 = vector.shape_cast %47 : vector<1x2x32xf32> to vector<2x32xf32>
    %49 = vector.shape_cast %45 : vector<2x32xf32> to vector<1x2x32xf32>
    tpu.vector_store %arg5[%46, %c0_26, %c0_27], %49 {strides = array<i32>} : memref<8x2x32xf32, #tpu.memory_space<vmem>>, vector<1x2x32xf32>,
    %c1_i32 = arith.constant 1 : i32
    %50 = arith.truncf %45 : vector<2x32xf32> to vector<2x32xbf16>
    %c0_28 = arith.constant 0 : index
    %51 = arith.index_cast %c1_i32 : i32 to index
    %c0_29 = arith.constant 0 : index
    %c0_30 = arith.constant 0 : index
    %52 = vector.load %arg1[%c0_28, %51, %c0_29, %c0_30] : memref<3x8x2x32xf32, #tpu.memory_space<vmem>>, vector<1x1x2x32xf32>
    %53 = vector.shape_cast %52 : vector<1x1x2x32xf32> to vector<2x32xf32>
    %cst_31 = arith.constant dense<0.000000e+00> : vector<2x32xf32>
    %54 = tpu.matmul %50, %4, %cst_31 {dimension_numbers = #tpu.dot_dimension_numbers<[1], [0], [0], [1], [0, 0, 1, 1], [], []>} : vector<2x32xbf16>, vector<32x32xbf16>, vector<2x32xf32> -> vector<2x32xf32>
    %55 = arith.addf %53, %54 : vector<2x32xf32>
    %c1_32 = arith.constant 1 : index
    %56 = arith.index_cast %c1_i32 : i32 to index
    %c0_33 = arith.constant 0 : index
    %c0_34 = arith.constant 0 : index
    %57 = vector.load %arg1[%c1_32, %56, %c0_33, %c0_34] : memref<3x8x2x32xf32, #tpu.memory_space<vmem>>, vector<1x1x2x32xf32>
    %58 = vector.shape_cast %57 : vector<1x1x2x32xf32> to vector<2x32xf32>
    %cst_35 = arith.constant dense<0.000000e+00> : vector<2x32xf32>
    %59 = tpu.matmul %50, %6, %cst_35 {dimension_numbers = #tpu.dot_dimension_numbers<[1], [0], [0], [1], [0, 0, 1, 1], [], []>} : vector<2x32xbf16>, vector<32x32xbf16>, vector<2x32xf32> -> vector<2x32xf32>
    %60 = arith.addf %58, %59 : vector<2x32xf32>
    %cst_36 = arith.constant dense<0.000000e+00> : vector<2x32xf32>
    %61 = tpu.matmul %50, %8, %cst_36 {dimension_numbers = #tpu.dot_dimension_numbers<[1], [0], [0], [1], [0, 0, 1, 1], [], []>} : vector<2x32xbf16>, vector<32x32xbf16>, vector<2x32xf32> -> vector<2x32xf32>
    %62 = vector.broadcast %9 : vector<1x32xf32> to vector<2x32xf32>
    %63 = arith.addf %61, %62 : vector<2x32xf32>
    %64 = arith.negf %55 : vector<2x32xf32>
    %65 = math.exp %64 : vector<2x32xf32>
    %cst_37 = arith.constant 1.000000e+00 : f32
    %66 = vector.broadcast %cst_37 : f32 to vector<2x32xf32>
    %67 = arith.addf %66, %65 : vector<2x32xf32>
    %68 = arith.divf %66, %67 : vector<2x32xf32>
    %69 = arith.negf %60 : vector<2x32xf32>
    %70 = math.exp %69 : vector<2x32xf32>
    %cst_38 = arith.constant 1.000000e+00 : f32
    %71 = vector.broadcast %cst_38 : f32 to vector<2x32xf32>
    %72 = arith.addf %71, %70 : vector<2x32xf32>
    %73 = arith.divf %71, %72 : vector<2x32xf32>
    %c2_39 = arith.constant 2 : index
    %74 = arith.index_cast %c1_i32 : i32 to index
    %c0_40 = arith.constant 0 : index
    %c0_41 = arith.constant 0 : index
    %75 = vector.load %arg1[%c2_39, %74, %c0_40, %c0_41] : memref<3x8x2x32xf32, #tpu.memory_space<vmem>>, vector<1x1x2x32xf32>
    %76 = vector.shape_cast %75 : vector<1x1x2x32xf32> to vector<2x32xf32>
    %77 = arith.mulf %68, %63 : vector<2x32xf32>
    %78 = arith.addf %76, %77 : vector<2x32xf32>
    %79 = math.tanh %78 : vector<2x32xf32>
    %cst_42 = arith.constant 1.000000e+00 : f32
    %80 = vector.broadcast %cst_42 : f32 to vector<2x32xf32>
    %81 = arith.subf %80, %73 : vector<2x32xf32>
    %82 = arith.mulf %81, %79 : vector<2x32xf32>
    %83 = arith.mulf %73, %45 : vector<2x32xf32>
    %84 = arith.addf %82, %83 : vector<2x32xf32>
    %85 = arith.index_cast %c1_i32 : i32 to index
    %c0_43 = arith.constant 0 : index
    %c0_44 = arith.constant 0 : index
    %86 = vector.load %arg5[%85, %c0_43, %c0_44] : memref<8x2x32xf32, #tpu.memory_space<vmem>>, vector<1x2x32xf32>
    %87 = vector.shape_cast %86 : vector<1x2x32xf32> to vector<2x32xf32>
    %88 = vector.shape_cast %84 : vector<2x32xf32> to vector<1x2x32xf32>
    tpu.vector_store %arg5[%85, %c0_43, %c0_44], %88 {strides = array<i32>} : memref<8x2x32xf32, #tpu.memory_space<vmem>>, vector<1x2x32xf32>,
    %c2_i32 = arith.constant 2 : i32
    %89 = arith.truncf %84 : vector<2x32xf32> to vector<2x32xbf16>
    %c0_45 = arith.constant 0 : index
    %90 = arith.index_cast %c2_i32 : i32 to index
    %c0_46 = arith.constant 0 : index
    %c0_47 = arith.constant 0 : index
    %91 = vector.load %arg1[%c0_45, %90, %c0_46, %c0_47] : memref<3x8x2x32xf32, #tpu.memory_space<vmem>>, vector<1x1x2x32xf32>
    %92 = vector.shape_cast %91 : vector<1x1x2x32xf32> to vector<2x32xf32>
    %cst_48 = arith.constant dense<0.000000e+00> : vector<2x32xf32>
    %93 = tpu.matmul %89, %4, %cst_48 {dimension_numbers = #tpu.dot_dimension_numbers<[1], [0], [0], [1], [0, 0, 1, 1], [], []>} : vector<2x32xbf16>, vector<32x32xbf16>, vector<2x32xf32> -> vector<2x32xf32>
    %94 = arith.addf %92, %93 : vector<2x32xf32>
    %c1_49 = arith.constant 1 : index
    %95 = arith.index_cast %c2_i32 : i32 to index
    %c0_50 = arith.constant 0 : index
    %c0_51 = arith.constant 0 : index
    %96 = vector.load %arg1[%c1_49, %95, %c0_50, %c0_51] : memref<3x8x2x32xf32, #tpu.memory_space<vmem>>, vector<1x1x2x32xf32>
    %97 = vector.shape_cast %96 : vector<1x1x2x32xf32> to vector<2x32xf32>
    %cst_52 = arith.constant dense<0.000000e+00> : vector<2x32xf32>
    %98 = tpu.matmul %89, %6, %cst_52 {dimension_numbers = #tpu.dot_dimension_numbers<[1], [0], [0], [1], [0, 0, 1, 1], [], []>} : vector<2x32xbf16>, vector<32x32xbf16>, vector<2x32xf32> -> vector<2x32xf32>
    %99 = arith.addf %97, %98 : vector<2x32xf32>
    %cst_53 = arith.constant dense<0.000000e+00> : vector<2x32xf32>
    %100 = tpu.matmul %89, %8, %cst_53 {dimension_numbers = #tpu.dot_dimension_numbers<[1], [0], [0], [1], [0, 0, 1, 1], [], []>} : vector<2x32xbf16>, vector<32x32xbf16>, vector<2x32xf32> -> vector<2x32xf32>
    %101 = vector.broadcast %9 : vector<1x32xf32> to vector<2x32xf32>
    %102 = arith.addf %100, %101 : vector<2x32xf32>
    %103 = arith.negf %94 : vector<2x32xf32>
    %104 = math.exp %103 : vector<2x32xf32>
    %cst_54 = arith.constant 1.000000e+00 : f32
    %105 = vector.broadcast %cst_54 : f32 to vector<2x32xf32>
    %106 = arith.addf %105, %104 : vector<2x32xf32>
    %107 = arith.divf %105, %106 : vector<2x32xf32>
    %108 = arith.negf %99 : vector<2x32xf32>
    %109 = math.exp %108 : vector<2x32xf32>
    %cst_55 = arith.constant 1.000000e+00 : f32
    %110 = vector.broadcast %cst_55 : f32 to vector<2x32xf32>
    %111 = arith.addf %110, %109 : vector<2x32xf32>
    %112 = arith.divf %110, %111 : vector<2x32xf32>
    %c2_56 = arith.constant 2 : index
    %113 = arith.index_cast %c2_i32 : i32 to index
    %c0_57 = arith.constant 0 : index
    %c0_58 = arith.constant 0 : index
    %114 = vector.load %arg1[%c2_56, %113, %c0_57, %c0_58] : memref<3x8x2x32xf32, #tpu.memory_space<vmem>>, vector<1x1x2x32xf32>
    %115 = vector.shape_cast %114 : vector<1x1x2x32xf32> to vector<2x32xf32>
    %116 = arith.mulf %107, %102 : vector<2x32xf32>
    %117 = arith.addf %115, %116 : vector<2x32xf32>
    %118 = math.tanh %117 : vector<2x32xf32>
    %cst_59 = arith.constant 1.000000e+00 : f32
    %119 = vector.broadcast %cst_59 : f32 to vector<2x32xf32>
    %120 = arith.subf %119, %112 : vector<2x32xf32>
    %121 = arith.mulf %120, %118 : vector<2x32xf32>
    %122 = arith.mulf %112, %84 : vector<2x32xf32>
    %123 = arith.addf %121, %122 : vector<2x32xf32>
    %124 = arith.index_cast %c2_i32 : i32 to index
    %c0_60 = arith.constant 0 : index
    %c0_61 = arith.constant 0 : index
    %125 = vector.load %arg5[%124, %c0_60, %c0_61] : memref<8x2x32xf32, #tpu.memory_space<vmem>>, vector<1x2x32xf32>
    %126 = vector.shape_cast %125 : vector<1x2x32xf32> to vector<2x32xf32>
    %127 = vector.shape_cast %123 : vector<2x32xf32> to vector<1x2x32xf32>
    tpu.vector_store %arg5[%124, %c0_60, %c0_61], %127 {strides = array<i32>} : memref<8x2x32xf32, #tpu.memory_space<vmem>>, vector<1x2x32xf32>,
    %c3_i32 = arith.constant 3 : i32
    %128 = arith.truncf %123 : vector<2x32xf32> to vector<2x32xbf16>
    %c0_62 = arith.constant 0 : index
    %129 = arith.index_cast %c3_i32 : i32 to index
    %c0_63 = arith.constant 0 : index
    %c0_64 = arith.constant 0 : index
    %130 = vector.load %arg1[%c0_62, %129, %c0_63, %c0_64] : memref<3x8x2x32xf32, #tpu.memory_space<vmem>>, vector<1x1x2x32xf32>
    %131 = vector.shape_cast %130 : vector<1x1x2x32xf32> to vector<2x32xf32>
    %cst_65 = arith.constant dense<0.000000e+00> : vector<2x32xf32>
    %132 = tpu.matmul %128, %4, %cst_65 {dimension_numbers = #tpu.dot_dimension_numbers<[1], [0], [0], [1], [0, 0, 1, 1], [], []>} : vector<2x32xbf16>, vector<32x32xbf16>, vector<2x32xf32> -> vector<2x32xf32>
    %133 = arith.addf %131, %132 : vector<2x32xf32>
    %c1_66 = arith.constant 1 : index
    %134 = arith.index_cast %c3_i32 : i32 to index
    %c0_67 = arith.constant 0 : index
    %c0_68 = arith.constant 0 : index
    %135 = vector.load %arg1[%c1_66, %134, %c0_67, %c0_68] : memref<3x8x2x32xf32, #tpu.memory_space<vmem>>, vector<1x1x2x32xf32>
    %136 = vector.shape_cast %135 : vector<1x1x2x32xf32> to vector<2x32xf32>
    %cst_69 = arith.constant dense<0.000000e+00> : vector<2x32xf32>
    %137 = tpu.matmul %128, %6, %cst_69 {dimension_numbers = #tpu.dot_dimension_numbers<[1], [0], [0], [1], [0, 0, 1, 1], [], []>} : vector<2x32xbf16>, vector<32x32xbf16>, vector<2x32xf32> -> vector<2x32xf32>
    %138 = arith.addf %136, %137 : vector<2x32xf32>
    %cst_70 = arith.constant dense<0.000000e+00> : vector<2x32xf32>
    %139 = tpu.matmul %128, %8, %cst_70 {dimension_numbers = #tpu.dot_dimension_numbers<[1], [0], [0], [1], [0, 0, 1, 1], [], []>} : vector<2x32xbf16>, vector<32x32xbf16>, vector<2x32xf32> -> vector<2x32xf32>
    %140 = vector.broadcast %9 : vector<1x32xf32> to vector<2x32xf32>
    %141 = arith.addf %139, %140 : vector<2x32xf32>
    %142 = arith.negf %133 : vector<2x32xf32>
    %143 = math.exp %142 : vector<2x32xf32>
    %cst_71 = arith.constant 1.000000e+00 : f32
    %144 = vector.broadcast %cst_71 : f32 to vector<2x32xf32>
    %145 = arith.addf %144, %143 : vector<2x32xf32>
    %146 = arith.divf %144, %145 : vector<2x32xf32>
    %147 = arith.negf %138 : vector<2x32xf32>
    %148 = math.exp %147 : vector<2x32xf32>
    %cst_72 = arith.constant 1.000000e+00 : f32
    %149 = vector.broadcast %cst_72 : f32 to vector<2x32xf32>
    %150 = arith.addf %149, %148 : vector<2x32xf32>
    %151 = arith.divf %149, %150 : vector<2x32xf32>
    %c2_73 = arith.constant 2 : index
    %152 = arith.index_cast %c3_i32 : i32 to index
    %c0_74 = arith.constant 0 : index
    %c0_75 = arith.constant 0 : index
    %153 = vector.load %arg1[%c2_73, %152, %c0_74, %c0_75] : memref<3x8x2x32xf32, #tpu.memory_space<vmem>>, vector<1x1x2x32xf32>
    %154 = vector.shape_cast %153 : vector<1x1x2x32xf32> to vector<2x32xf32>
    %155 = arith.mulf %146, %141 : vector<2x32xf32>
    %156 = arith.addf %154, %155 : vector<2x32xf32>
    %157 = math.tanh %156 : vector<2x32xf32>
    %cst_76 = arith.constant 1.000000e+00 : f32
    %158 = vector.broadcast %cst_76 : f32 to vector<2x32xf32>
    %159 = arith.subf %158, %151 : vector<2x32xf32>
    %160 = arith.mulf %159, %157 : vector<2x32xf32>
    %161 = arith.mulf %151, %123 : vector<2x32xf32>
    %162 = arith.addf %160, %161 : vector<2x32xf32>
    %163 = arith.index_cast %c3_i32 : i32 to index
    %c0_77 = arith.constant 0 : index
    %c0_78 = arith.constant 0 : index
    %164 = vector.load %arg5[%163, %c0_77, %c0_78] : memref<8x2x32xf32, #tpu.memory_space<vmem>>, vector<1x2x32xf32>
    %165 = vector.shape_cast %164 : vector<1x2x32xf32> to vector<2x32xf32>
    %166 = vector.shape_cast %162 : vector<2x32xf32> to vector<1x2x32xf32>
    tpu.vector_store %arg5[%163, %c0_77, %c0_78], %166 {strides = array<i32>} : memref<8x2x32xf32, #tpu.memory_space<vmem>>, vector<1x2x32xf32>,
    %c4_i32 = arith.constant 4 : i32
    %167 = arith.truncf %162 : vector<2x32xf32> to vector<2x32xbf16>
    %c0_79 = arith.constant 0 : index
    %168 = arith.index_cast %c4_i32 : i32 to index
    %c0_80 = arith.constant 0 : index
    %c0_81 = arith.constant 0 : index
    %169 = vector.load %arg1[%c0_79, %168, %c0_80, %c0_81] : memref<3x8x2x32xf32, #tpu.memory_space<vmem>>, vector<1x1x2x32xf32>
    %170 = vector.shape_cast %169 : vector<1x1x2x32xf32> to vector<2x32xf32>
    %cst_82 = arith.constant dense<0.000000e+00> : vector<2x32xf32>
    %171 = tpu.matmul %167, %4, %cst_82 {dimension_numbers = #tpu.dot_dimension_numbers<[1], [0], [0], [1], [0, 0, 1, 1], [], []>} : vector<2x32xbf16>, vector<32x32xbf16>, vector<2x32xf32> -> vector<2x32xf32>
    %172 = arith.addf %170, %171 : vector<2x32xf32>
    %c1_83 = arith.constant 1 : index
    %173 = arith.index_cast %c4_i32 : i32 to index
    %c0_84 = arith.constant 0 : index
    %c0_85 = arith.constant 0 : index
    %174 = vector.load %arg1[%c1_83, %173, %c0_84, %c0_85] : memref<3x8x2x32xf32, #tpu.memory_space<vmem>>, vector<1x1x2x32xf32>
    %175 = vector.shape_cast %174 : vector<1x1x2x32xf32> to vector<2x32xf32>
    %cst_86 = arith.constant dense<0.000000e+00> : vector<2x32xf32>
    %176 = tpu.matmul %167, %6, %cst_86 {dimension_numbers = #tpu.dot_dimension_numbers<[1], [0], [0], [1], [0, 0, 1, 1], [], []>} : vector<2x32xbf16>, vector<32x32xbf16>, vector<2x32xf32> -> vector<2x32xf32>
    %177 = arith.addf %175, %176 : vector<2x32xf32>
    %cst_87 = arith.constant dense<0.000000e+00> : vector<2x32xf32>
    %178 = tpu.matmul %167, %8, %cst_87 {dimension_numbers = #tpu.dot_dimension_numbers<[1], [0], [0], [1], [0, 0, 1, 1], [], []>} : vector<2x32xbf16>, vector<32x32xbf16>, vector<2x32xf32> -> vector<2x32xf32>
    %179 = vector.broadcast %9 : vector<1x32xf32> to vector<2x32xf32>
    %180 = arith.addf %178, %179 : vector<2x32xf32>
    %181 = arith.negf %172 : vector<2x32xf32>
    %182 = math.exp %181 : vector<2x32xf32>
    %cst_88 = arith.constant 1.000000e+00 : f32
    %183 = vector.broadcast %cst_88 : f32 to vector<2x32xf32>
    %184 = arith.addf %183, %182 : vector<2x32xf32>
    %185 = arith.divf %183, %184 : vector<2x32xf32>
    %186 = arith.negf %177 : vector<2x32xf32>
    %187 = math.exp %186 : vector<2x32xf32>
    %cst_89 = arith.constant 1.000000e+00 : f32
    %188 = vector.broadcast %cst_89 : f32 to vector<2x32xf32>
    %189 = arith.addf %188, %187 : vector<2x32xf32>
    %190 = arith.divf %188, %189 : vector<2x32xf32>
    %c2_90 = arith.constant 2 : index
    %191 = arith.index_cast %c4_i32 : i32 to index
    %c0_91 = arith.constant 0 : index
    %c0_92 = arith.constant 0 : index
    %192 = vector.load %arg1[%c2_90, %191, %c0_91, %c0_92] : memref<3x8x2x32xf32, #tpu.memory_space<vmem>>, vector<1x1x2x32xf32>
    %193 = vector.shape_cast %192 : vector<1x1x2x32xf32> to vector<2x32xf32>
    %194 = arith.mulf %185, %180 : vector<2x32xf32>
    %195 = arith.addf %193, %194 : vector<2x32xf32>
    %196 = math.tanh %195 : vector<2x32xf32>
    %cst_93 = arith.constant 1.000000e+00 : f32
    %197 = vector.broadcast %cst_93 : f32 to vector<2x32xf32>
    %198 = arith.subf %197, %190 : vector<2x32xf32>
    %199 = arith.mulf %198, %196 : vector<2x32xf32>
    %200 = arith.mulf %190, %162 : vector<2x32xf32>
    %201 = arith.addf %199, %200 : vector<2x32xf32>
    %202 = arith.index_cast %c4_i32 : i32 to index
    %c0_94 = arith.constant 0 : index
    %c0_95 = arith.constant 0 : index
    %203 = vector.load %arg5[%202, %c0_94, %c0_95] : memref<8x2x32xf32, #tpu.memory_space<vmem>>, vector<1x2x32xf32>
    %204 = vector.shape_cast %203 : vector<1x2x32xf32> to vector<2x32xf32>
    %205 = vector.shape_cast %201 : vector<2x32xf32> to vector<1x2x32xf32>
    tpu.vector_store %arg5[%202, %c0_94, %c0_95], %205 {strides = array<i32>} : memref<8x2x32xf32, #tpu.memory_space<vmem>>, vector<1x2x32xf32>,
    %c5_i32 = arith.constant 5 : i32
    %206 = arith.truncf %201 : vector<2x32xf32> to vector<2x32xbf16>
    %c0_96 = arith.constant 0 : index
    %207 = arith.index_cast %c5_i32 : i32 to index
    %c0_97 = arith.constant 0 : index
    %c0_98 = arith.constant 0 : index
    %208 = vector.load %arg1[%c0_96, %207, %c0_97, %c0_98] : memref<3x8x2x32xf32, #tpu.memory_space<vmem>>, vector<1x1x2x32xf32>
    %209 = vector.shape_cast %208 : vector<1x1x2x32xf32> to vector<2x32xf32>
    %cst_99 = arith.constant dense<0.000000e+00> : vector<2x32xf32>
    %210 = tpu.matmul %206, %4, %cst_99 {dimension_numbers = #tpu.dot_dimension_numbers<[1], [0], [0], [1], [0, 0, 1, 1], [], []>} : vector<2x32xbf16>, vector<32x32xbf16>, vector<2x32xf32> -> vector<2x32xf32>
    %211 = arith.addf %209, %210 : vector<2x32xf32>
    %c1_100 = arith.constant 1 : index
    %212 = arith.index_cast %c5_i32 : i32 to index
    %c0_101 = arith.constant 0 : index
    %c0_102 = arith.constant 0 : index
    %213 = vector.load %arg1[%c1_100, %212, %c0_101, %c0_102] : memref<3x8x2x32xf32, #tpu.memory_space<vmem>>, vector<1x1x2x32xf32>
    %214 = vector.shape_cast %213 : vector<1x1x2x32xf32> to vector<2x32xf32>
    %cst_103 = arith.constant dense<0.000000e+00> : vector<2x32xf32>
    %215 = tpu.matmul %206, %6, %cst_103 {dimension_numbers = #tpu.dot_dimension_numbers<[1], [0], [0], [1], [0, 0, 1, 1], [], []>} : vector<2x32xbf16>, vector<32x32xbf16>, vector<2x32xf32> -> vector<2x32xf32>
    %216 = arith.addf %214, %215 : vector<2x32xf32>
    %cst_104 = arith.constant dense<0.000000e+00> : vector<2x32xf32>
    %217 = tpu.matmul %206, %8, %cst_104 {dimension_numbers = #tpu.dot_dimension_numbers<[1], [0], [0], [1], [0, 0, 1, 1], [], []>} : vector<2x32xbf16>, vector<32x32xbf16>, vector<2x32xf32> -> vector<2x32xf32>
    %218 = vector.broadcast %9 : vector<1x32xf32> to vector<2x32xf32>
    %219 = arith.addf %217, %218 : vector<2x32xf32>
    %220 = arith.negf %211 : vector<2x32xf32>
    %221 = math.exp %220 : vector<2x32xf32>
    %cst_105 = arith.constant 1.000000e+00 : f32
    %222 = vector.broadcast %cst_105 : f32 to vector<2x32xf32>
    %223 = arith.addf %222, %221 : vector<2x32xf32>
    %224 = arith.divf %222, %223 : vector<2x32xf32>
    %225 = arith.negf %216 : vector<2x32xf32>
    %226 = math.exp %225 : vector<2x32xf32>
    %cst_106 = arith.constant 1.000000e+00 : f32
    %227 = vector.broadcast %cst_106 : f32 to vector<2x32xf32>
    %228 = arith.addf %227, %226 : vector<2x32xf32>
    %229 = arith.divf %227, %228 : vector<2x32xf32>
    %c2_107 = arith.constant 2 : index
    %230 = arith.index_cast %c5_i32 : i32 to index
    %c0_108 = arith.constant 0 : index
    %c0_109 = arith.constant 0 : index
    %231 = vector.load %arg1[%c2_107, %230, %c0_108, %c0_109] : memref<3x8x2x32xf32, #tpu.memory_space<vmem>>, vector<1x1x2x32xf32>
    %232 = vector.shape_cast %231 : vector<1x1x2x32xf32> to vector<2x32xf32>
    %233 = arith.mulf %224, %219 : vector<2x32xf32>
    %234 = arith.addf %232, %233 : vector<2x32xf32>
    %235 = math.tanh %234 : vector<2x32xf32>
    %cst_110 = arith.constant 1.000000e+00 : f32
    %236 = vector.broadcast %cst_110 : f32 to vector<2x32xf32>
    %237 = arith.subf %236, %229 : vector<2x32xf32>
    %238 = arith.mulf %237, %235 : vector<2x32xf32>
    %239 = arith.mulf %229, %201 : vector<2x32xf32>
    %240 = arith.addf %238, %239 : vector<2x32xf32>
    %241 = arith.index_cast %c5_i32 : i32 to index
    %c0_111 = arith.constant 0 : index
    %c0_112 = arith.constant 0 : index
    %242 = vector.load %arg5[%241, %c0_111, %c0_112] : memref<8x2x32xf32, #tpu.memory_space<vmem>>, vector<1x2x32xf32>
    %243 = vector.shape_cast %242 : vector<1x2x32xf32> to vector<2x32xf32>
    %244 = vector.shape_cast %240 : vector<2x32xf32> to vector<1x2x32xf32>
    tpu.vector_store %arg5[%241, %c0_111, %c0_112], %244 {strides = array<i32>} : memref<8x2x32xf32, #tpu.memory_space<vmem>>, vector<1x2x32xf32>,
    %c6_i32 = arith.constant 6 : i32
    %245 = arith.truncf %240 : vector<2x32xf32> to vector<2x32xbf16>
    %c0_113 = arith.constant 0 : index
    %246 = arith.index_cast %c6_i32 : i32 to index
    %c0_114 = arith.constant 0 : index
    %c0_115 = arith.constant 0 : index
    %247 = vector.load %arg1[%c0_113, %246, %c0_114, %c0_115] : memref<3x8x2x32xf32, #tpu.memory_space<vmem>>, vector<1x1x2x32xf32>
    %248 = vector.shape_cast %247 : vector<1x1x2x32xf32> to vector<2x32xf32>
    %cst_116 = arith.constant dense<0.000000e+00> : vector<2x32xf32>
    %249 = tpu.matmul %245, %4, %cst_116 {dimension_numbers = #tpu.dot_dimension_numbers<[1], [0], [0], [1], [0, 0, 1, 1], [], []>} : vector<2x32xbf16>, vector<32x32xbf16>, vector<2x32xf32> -> vector<2x32xf32>
    %250 = arith.addf %248, %249 : vector<2x32xf32>
    %c1_117 = arith.constant 1 : index
    %251 = arith.index_cast %c6_i32 : i32 to index
    %c0_118 = arith.constant 0 : index
    %c0_119 = arith.constant 0 : index
    %252 = vector.load %arg1[%c1_117, %251, %c0_118, %c0_119] : memref<3x8x2x32xf32, #tpu.memory_space<vmem>>, vector<1x1x2x32xf32>
    %253 = vector.shape_cast %252 : vector<1x1x2x32xf32> to vector<2x32xf32>
    %cst_120 = arith.constant dense<0.000000e+00> : vector<2x32xf32>
    %254 = tpu.matmul %245, %6, %cst_120 {dimension_numbers = #tpu.dot_dimension_numbers<[1], [0], [0], [1], [0, 0, 1, 1], [], []>} : vector<2x32xbf16>, vector<32x32xbf16>, vector<2x32xf32> -> vector<2x32xf32>
    %255 = arith.addf %253, %254 : vector<2x32xf32>
    %cst_121 = arith.constant dense<0.000000e+00> : vector<2x32xf32>
    %256 = tpu.matmul %245, %8, %cst_121 {dimension_numbers = #tpu.dot_dimension_numbers<[1], [0], [0], [1], [0, 0, 1, 1], [], []>} : vector<2x32xbf16>, vector<32x32xbf16>, vector<2x32xf32> -> vector<2x32xf32>
    %257 = vector.broadcast %9 : vector<1x32xf32> to vector<2x32xf32>
    %258 = arith.addf %256, %257 : vector<2x32xf32>
    %259 = arith.negf %250 : vector<2x32xf32>
    %260 = math.exp %259 : vector<2x32xf32>
    %cst_122 = arith.constant 1.000000e+00 : f32
    %261 = vector.broadcast %cst_122 : f32 to vector<2x32xf32>
    %262 = arith.addf %261, %260 : vector<2x32xf32>
    %263 = arith.divf %261, %262 : vector<2x32xf32>
    %264 = arith.negf %255 : vector<2x32xf32>
    %265 = math.exp %264 : vector<2x32xf32>
    %cst_123 = arith.constant 1.000000e+00 : f32
    %266 = vector.broadcast %cst_123 : f32 to vector<2x32xf32>
    %267 = arith.addf %266, %265 : vector<2x32xf32>
    %268 = arith.divf %266, %267 : vector<2x32xf32>
    %c2_124 = arith.constant 2 : index
    %269 = arith.index_cast %c6_i32 : i32 to index
    %c0_125 = arith.constant 0 : index
    %c0_126 = arith.constant 0 : index
    %270 = vector.load %arg1[%c2_124, %269, %c0_125, %c0_126] : memref<3x8x2x32xf32, #tpu.memory_space<vmem>>, vector<1x1x2x32xf32>
    %271 = vector.shape_cast %270 : vector<1x1x2x32xf32> to vector<2x32xf32>
    %272 = arith.mulf %263, %258 : vector<2x32xf32>
    %273 = arith.addf %271, %272 : vector<2x32xf32>
    %274 = math.tanh %273 : vector<2x32xf32>
    %cst_127 = arith.constant 1.000000e+00 : f32
    %275 = vector.broadcast %cst_127 : f32 to vector<2x32xf32>
    %276 = arith.subf %275, %268 : vector<2x32xf32>
    %277 = arith.mulf %276, %274 : vector<2x32xf32>
    %278 = arith.mulf %268, %240 : vector<2x32xf32>
    %279 = arith.addf %277, %278 : vector<2x32xf32>
    %280 = arith.index_cast %c6_i32 : i32 to index
    %c0_128 = arith.constant 0 : index
    %c0_129 = arith.constant 0 : index
    %281 = vector.load %arg5[%280, %c0_128, %c0_129] : memref<8x2x32xf32, #tpu.memory_space<vmem>>, vector<1x2x32xf32>
    %282 = vector.shape_cast %281 : vector<1x2x32xf32> to vector<2x32xf32>
    %283 = vector.shape_cast %279 : vector<2x32xf32> to vector<1x2x32xf32>
    tpu.vector_store %arg5[%280, %c0_128, %c0_129], %283 {strides = array<i32>} : memref<8x2x32xf32, #tpu.memory_space<vmem>>, vector<1x2x32xf32>,
    %c7_i32 = arith.constant 7 : i32
    %284 = arith.truncf %279 : vector<2x32xf32> to vector<2x32xbf16>
    %c0_130 = arith.constant 0 : index
    %285 = arith.index_cast %c7_i32 : i32 to index
    %c0_131 = arith.constant 0 : index
    %c0_132 = arith.constant 0 : index
    %286 = vector.load %arg1[%c0_130, %285, %c0_131, %c0_132] : memref<3x8x2x32xf32, #tpu.memory_space<vmem>>, vector<1x1x2x32xf32>
    %287 = vector.shape_cast %286 : vector<1x1x2x32xf32> to vector<2x32xf32>
    %cst_133 = arith.constant dense<0.000000e+00> : vector<2x32xf32>
    %288 = tpu.matmul %284, %4, %cst_133 {dimension_numbers = #tpu.dot_dimension_numbers<[1], [0], [0], [1], [0, 0, 1, 1], [], []>} : vector<2x32xbf16>, vector<32x32xbf16>, vector<2x32xf32> -> vector<2x32xf32>
    %289 = arith.addf %287, %288 : vector<2x32xf32>
    %c1_134 = arith.constant 1 : index
    %290 = arith.index_cast %c7_i32 : i32 to index
    %c0_135 = arith.constant 0 : index
    %c0_136 = arith.constant 0 : index
    %291 = vector.load %arg1[%c1_134, %290, %c0_135, %c0_136] : memref<3x8x2x32xf32, #tpu.memory_space<vmem>>, vector<1x1x2x32xf32>
    %292 = vector.shape_cast %291 : vector<1x1x2x32xf32> to vector<2x32xf32>
    %cst_137 = arith.constant dense<0.000000e+00> : vector<2x32xf32>
    %293 = tpu.matmul %284, %6, %cst_137 {dimension_numbers = #tpu.dot_dimension_numbers<[1], [0], [0], [1], [0, 0, 1, 1], [], []>} : vector<2x32xbf16>, vector<32x32xbf16>, vector<2x32xf32> -> vector<2x32xf32>
    %294 = arith.addf %292, %293 : vector<2x32xf32>
    %cst_138 = arith.constant dense<0.000000e+00> : vector<2x32xf32>
    %295 = tpu.matmul %284, %8, %cst_138 {dimension_numbers = #tpu.dot_dimension_numbers<[1], [0], [0], [1], [0, 0, 1, 1], [], []>} : vector<2x32xbf16>, vector<32x32xbf16>, vector<2x32xf32> -> vector<2x32xf32>
    %296 = vector.broadcast %9 : vector<1x32xf32> to vector<2x32xf32>
    %297 = arith.addf %295, %296 : vector<2x32xf32>
    %298 = arith.negf %289 : vector<2x32xf32>
    %299 = math.exp %298 : vector<2x32xf32>
    %cst_139 = arith.constant 1.000000e+00 : f32
    %300 = vector.broadcast %cst_139 : f32 to vector<2x32xf32>
    %301 = arith.addf %300, %299 : vector<2x32xf32>
    %302 = arith.divf %300, %301 : vector<2x32xf32>
    %303 = arith.negf %294 : vector<2x32xf32>
    %304 = math.exp %303 : vector<2x32xf32>
    %cst_140 = arith.constant 1.000000e+00 : f32
    %305 = vector.broadcast %cst_140 : f32 to vector<2x32xf32>
    %306 = arith.addf %305, %304 : vector<2x32xf32>
    %307 = arith.divf %305, %306 : vector<2x32xf32>
    %c2_141 = arith.constant 2 : index
    %308 = arith.index_cast %c7_i32 : i32 to index
    %c0_142 = arith.constant 0 : index
    %c0_143 = arith.constant 0 : index
    %309 = vector.load %arg1[%c2_141, %308, %c0_142, %c0_143] : memref<3x8x2x32xf32, #tpu.memory_space<vmem>>, vector<1x1x2x32xf32>
    %310 = vector.shape_cast %309 : vector<1x1x2x32xf32> to vector<2x32xf32>
    %311 = arith.mulf %302, %297 : vector<2x32xf32>
    %312 = arith.addf %310, %311 : vector<2x32xf32>
    %313 = math.tanh %312 : vector<2x32xf32>
    %cst_144 = arith.constant 1.000000e+00 : f32
    %314 = vector.broadcast %cst_144 : f32 to vector<2x32xf32>
    %315 = arith.subf %314, %307 : vector<2x32xf32>
    %316 = arith.mulf %315, %313 : vector<2x32xf32>
    %317 = arith.mulf %307, %279 : vector<2x32xf32>
    %318 = arith.addf %316, %317 : vector<2x32xf32>
    %319 = arith.index_cast %c7_i32 : i32 to index
    %c0_145 = arith.constant 0 : index
    %c0_146 = arith.constant 0 : index
    %320 = vector.load %arg5[%319, %c0_145, %c0_146] : memref<8x2x32xf32, #tpu.memory_space<vmem>>, vector<1x2x32xf32>
    %321 = vector.shape_cast %320 : vector<1x2x32xf32> to vector<2x32xf32>
    %322 = vector.shape_cast %318 : vector<2x32xf32> to vector<1x2x32xf32>
    tpu.vector_store %arg5[%319, %c0_145, %c0_146], %322 {strides = array<i32>} : memref<8x2x32xf32, #tpu.memory_space<vmem>>, vector<1x2x32xf32>,
    %c8_i32 = arith.constant 8 : i32
    %c0_147 = arith.constant 0 : index
    %c0_148 = arith.constant 0 : index
    %323 = vector.load %arg7[%c0_147, %c0_148] : memref<2x32xf32, #tpu.memory_space<vmem>>, vector<2x32xf32>
    tpu.vector_store %arg7[%c0_147, %c0_148], %318 {strides = array<i32>} : memref<2x32xf32, #tpu.memory_space<vmem>>, vector<2x32xf32>,
    %c0_i32_149 = arith.constant 0 : i32
    %324 = arith.cmpi eq, %arg0, %c0_i32_149 : i32
    %325 = arith.extui %324 : i1 to i32
    %c0_i32_150 = arith.constant 0 : i32
    %326 = arith.cmpi ne, %325, %c0_i32_150 : i32
    scf.if %326 {
      %c0_151 = arith.constant 0 : index
      %c0_152 = arith.constant 0 : index
      %327 = vector.load %arg6[%c0_151, %c0_152] : memref<2x32xf32, #tpu.memory_space<vmem>>, vector<2x32xf32>
      tpu.vector_store %arg6[%c0_151, %c0_152], %318 {strides = array<i32>} : memref<2x32xf32, #tpu.memory_space<vmem>>, vector<2x32xf32>,
    } else {
    }
    return
  }
  func.func @transform_0(%arg0: i32) -> (i32, i32, i32, i32) {
    %c0_i32 = arith.constant 0 : i32
    %c0_i32_0 = arith.constant 0 : i32
    %c0_i32_1 = arith.constant 0 : i32
    %c0_i32_2 = arith.constant 0 : i32
    return %c0_i32, %arg0, %c0_i32_0, %c0_i32_1 : i32, i32, i32, i32
  }
  func.func @transform_1(%arg0: i32) -> (i32, i32) {
    %c0_i32 = arith.constant 0 : i32
    %c0_i32_0 = arith.constant 0 : i32
    %c0_i32_1 = arith.constant 0 : i32
    return %c0_i32, %c0_i32_0 : i32, i32
  }
  func.func @transform_2(%arg0: i32) -> (i32, i32, i32) {
    %c0_i32 = arith.constant 0 : i32
    %c0_i32_0 = arith.constant 0 : i32
    %c0_i32_1 = arith.constant 0 : i32
    %c0_i32_2 = arith.constant 0 : i32
    return %c0_i32, %c0_i32_0, %c0_i32_1 : i32, i32, i32
  }
  func.func @transform_3(%arg0: i32) -> (i32, i32) {
    %c0_i32 = arith.constant 0 : i32
    %c0_i32_0 = arith.constant 0 : i32
    %c0_i32_1 = arith.constant 0 : i32
    return %c0_i32, %c0_i32_0 : i32, i32
  }
  func.func @transform_4(%arg0: i32) -> (i32, i32, i32) {
    %c0_i32 = arith.constant 0 : i32
    %c0_i32_0 = arith.constant 0 : i32
    %c0_i32_1 = arith.constant 0 : i32
    return %arg0, %c0_i32, %c0_i32_0 : i32, i32, i32
  }
  func.func @transform_5(%arg0: i32) -> (i32, i32) {
    %c0_i32 = arith.constant 0 : i32
    %c0_i32_0 = arith.constant 0 : i32
    %c0_i32_1 = arith.constant 0 : i32
    return %c0_i32, %c0_i32_0 : i32, i32
  }
}

</mosaic_0001>

<llo_original>
// kernel: tpu_custom_call.1
$region0: #{tpu_custom_call.1}
  #allocation0 [shape = 'u32[]', space=smem, size = 0x4, offset = 0x4, fixed_abs, tag = 'smem constant byte address 0x4 - core index']
  #allocation1 [shape = 'u32[144,128]{1,0:T(1,128)}', space=vmem, size = 0x12000, scoped, tag = 'internal scratch']
  #allocation2 [shape = 'f32[2,32]{1,0:T(2,128)}', space=vmem, size = 0x400, scoped, tag = 'scratch operand']
  %s0 = inlined_call_operand.hbm [shape: f32[3,8,2,32], index: 0, kind: input, shape index: {}]
  %s1 = inlined_call_operand.vmem [shape: f32[2,32], index: 1, kind: input, shape index: {}]
  %s2 = inlined_call_operand.hbm [shape: bf16[3,32,32], index: 2, kind: input, shape index: {}]
  %s3 = inlined_call_operand.vmem [shape: f32[1,32], index: 3, kind: input, shape index: {}]
  %s4 = inlined_call_operand.hbm [shape: f32[8,2,32], index: 4, kind: output, shape index: {0}]
  %s5 = inlined_call_operand.hbm [shape: f32[2,32], index: 5, kind: output, shape index: {1}]
  %6 = xla_tuple %s4, %s5
  %s7 = sld [smem:[#allocation0]]
  $region50: #{tpu_custom_call.1} parent=0
    _
  %s9 = ssub.s32 1, %s7
  %s10 = scalar_select 0, %s9, %s7
  $region1: #{tpu_custom_call.1} parent=0
    #allocation3 [shape = 'u8[24576]{0}', space=vmem, size = 0x6000, scoped, tag = 'input window, operand 0, single buffered']
    #allocation4 [shape = 's32[1]{0}', space=sflag, size = 0x4, scoped, tag = 'scoped memory for tpu_custom_call.1']
    #allocation5 [shape = 's32[1]{0}', space=sflag, size = 0x4, scoped, tag = 'scoped memory for tpu_custom_call.1']
    #allocation6 [shape = 'u8[24576]{0}', space=vmem, size = 0x6000, scoped, tag = 'input window, operand 2, single buffered']
    #allocation7 [shape = 's32[1]{0}', space=sflag, size = 0x4, scoped, tag = 'scoped memory for tpu_custom_call.1']
    #allocation8 [shape = 'u8[8192]{0}', space=vmem, size = 0x2000, scoped, tag = 'output window, operand 0, single buffered']
    #allocation9 [shape = 'u8[1024]{0}', space=vmem, size = 0x400, scoped, tag = 'output window, operand 1, single buffered']
    #allocation10 [shape = 's32[1]{0}', space=sflag, size = 0x4, scoped, tag = 'scoped memory for tpu_custom_call.1']
    %11 = vsyncpa [#allocation4], 0
    %12 = vsyncpa [#allocation7], 0
    %13 = vsyncpa [#allocation5], 0
    %14 = vsyncpa [#allocation10], 0
    // Predicated region
    $region2: #{tpu_custom_call.1} parent=1 // pred_check
      _
    $region3: #{tpu_custom_call.1} parent=1 // pred_check_branch
      %16 = sbr.rel (0) target = $region5
    $region4: #{tpu_custom_call.1} parent=1 // pred_region
      %s18 = ssub.s32 768, 768
      %19 = vsyncadd [#allocation4], %s18
      %s20 = sshll.u32 [#allocation3], 4
      %s21 = int_to_ptr.vmem [resolvable:$true] %s20
      %26 = dma.hbm_to_vmem [thread:$0]  %s0, 768, %s21, [#allocation4], 32, 32, 2
    $region5: #{tpu_custom_call.1} parent=1 // pred_fallthru
      _
    // Predicated region
    $region6: #{tpu_custom_call.1} parent=1 // pred_check
      _
    $region7: #{tpu_custom_call.1} parent=1 // pred_check_branch
      %28 = sbr.rel (0) target = $region9
    $region8: #{tpu_custom_call.1} parent=1 // pred_region
      _
    $region9: #{tpu_custom_call.1} parent=1 // pred_fallthru
      _
    // Predicated region
    $region10: #{tpu_custom_call.1} parent=1 // pred_check
      _
    $region11: #{tpu_custom_call.1} parent=1 // pred_check_branch
      %30 = sbr.rel (0) target = $region13
    $region12: #{tpu_custom_call.1} parent=1 // pred_region
      %s32 = ssub.s32 768, 768
      %33 = vsyncadd [#allocation7], %s32
      %s34 = sshll.u32 [#allocation6], 4
      %s35 = int_to_ptr.vmem [resolvable:$true] %s34
      %40 = dma.hbm_to_vmem [thread:$0]  %s2, 768, %s35, [#allocation7], 64, 64, 4
    $region13: #{tpu_custom_call.1} parent=1 // pred_fallthru
      _
    // Predicated region
    $region14: #{tpu_custom_call.1} parent=1 // pred_check
      _
    $region15: #{tpu_custom_call.1} parent=1 // pred_check_branch
      %42 = sbr.rel (0) target = $region17
    $region16: #{tpu_custom_call.1} parent=1 // pred_region
      _
    $region17: #{tpu_custom_call.1} parent=1 // pred_fallthru
      _
    // Predicated region
    $region18: #{tpu_custom_call.1} parent=1 // pred_check
      _
    $region19: #{tpu_custom_call.1} parent=1 // pred_check_branch
      %44 = sbr.rel (0) target = $region21
    $region20: #{tpu_custom_call.1} parent=1 // pred_region
      %45 = dma.done [#allocation4], 768
    $region21: #{tpu_custom_call.1} parent=1 // pred_fallthru
      _
    // Predicated region
    $region22: #{tpu_custom_call.1} parent=1 // pred_check
      _
    $region23: #{tpu_custom_call.1} parent=1 // pred_check_branch
      %47 = sbr.rel (0) target = $region25
    $region24: #{tpu_custom_call.1} parent=1 // pred_region
      %48 = dma.done [#allocation7], 768
    $region25: #{tpu_custom_call.1} parent=1 // pred_fallthru
      _
    %p50 = scmp.eq.s32.totalorder 0, 0
    // Predicated region
    $region26: #{tpu_custom_call.1} parent=1 // pred_check
      %p51 = pneg %p50
    $region27: #{tpu_custom_call.1} parent=1 // pred_check_branch
      %53 = sbr.rel (%p51) target = $region29
    $region28: #{tpu_custom_call.1} parent=1 // pred_region
      %v54 = vld [vmem:[%s1] sm:$0x3]
      %vm55 = vcmask 254976
      %56 = vst.msk [vmem:[#allocation2] sm:$0x3] %vm55, %v54
    $region29: #{tpu_custom_call.1} parent=1 // pred_fallthru
      _
    %v57 = vld [vmem:[#allocation6] sm:$0xf]
    %v58 = vld [vmem:[#allocation6 + $0x4] sm:$0xf]
    %v59 = vld [vmem:[#allocation6 + $0x8] sm:$0xf]
    %v60 = vld [vmem:[#allocation6 + $0xc] sm:$0xf]
    %s61 = scalar_lea.vmem [#allocation6], 16
    %v62 = vld [vmem:[%s61] sm:$0xf]
    %v63 = vld [vmem:[%s61 + $0x4] sm:$0xf]
    %v64 = vld [vmem:[%s61 + $0x8] sm:$0xf]
    %v65 = vld [vmem:[%s61 + $0xc] sm:$0xf]
    %s66 = scalar_lea.vmem [#allocation6], 32
    %v67 = vld [vmem:[%s66] sm:$0xf]
    %v68 = vld [vmem:[%s66 + $0x4] sm:$0xf]
    %v69 = vld [vmem:[%s66 + $0x8] sm:$0xf]
    %v70 = vld [vmem:[%s66 + $0xc] sm:$0xf]
    %v71 = vld [vmem:[%s3] sm:$0x1]
    %v72 = vld [vmem:[#allocation2] sm:$0x3]
    %v73 = vpack.c.bf16 %v72, %v72
    %v74 = vld [vmem:[#allocation3] sm:$0x3]
    %v79 = vunpack.c.l.b16 %v57
    %v80 = vunpack.c.l.b16 %v58
    %v81 = vunpack.c.l.b16 %v59
    %v82 = vunpack.c.l.b16 %v60
    %v83 = vpack.c.b16 %v80, %v79
    %v84 = vpack.c.b16 %v82, %v81
    %vm87 = vcmask 261120
    %v89 = vsel %vm87, %v73, 0
    %91 = vmatprep.subr.bf16.mxu0 0
    %92 = vmatpush1.bf16.msra.mxu0 %v83
    %93 = vmatprep.subr.bf16.mxu0 0
    %94 = vmatpush1.bf16.msra.mxu0 %v84
    %95 = vmatprep.subr.bf16.mxu0 0
    %96 = vmatpush1.bf16.msra.mxu0 0
    %97 = vmatprep.subr.bf16.mxu0 0
    %98 = vmatpush1.bf16.msra.mxu0 0
    %99 = vmatprep.subr.bf16.mxu0 0
    %100 = vmatpush1.bf16.msra.mxu0 0
    %101 = vmatprep.subr.bf16.mxu0 0
    %102 = vmatpush1.bf16.msra.mxu0 0
    %103 = vmatprep.subr.bf16.mxu0 0
    %104 = vmatpush1.bf16.msra.mxu0 0
    %105 = vmatprep.subr.bf16.mxu0 0
    %106 = vmatpush1.bf16.msra.mxu0 0
    %107 = vmatprep.subr.bf16.mxu0 0
    %108 = vmatpush1.bf16.msra.mxu0 0
    %109 = vmatprep.subr.bf16.mxu0 0
    %110 = vmatpush1.bf16.msra.mxu0 0
    %111 = vmatprep.subr.bf16.mxu0 0
    %112 = vmatpush1.bf16.msra.mxu0 0
    %113 = vmatprep.subr.bf16.mxu0 0
    %114 = vmatpush1.bf16.msra.mxu0 0
    %115 = vmatprep.subr.bf16.mxu0 0
    %116 = vmatpush1.bf16.msra.mxu0 0
    %117 = vmatprep.subr.bf16.mxu0 0
    %118 = vmatpush1.bf16.msra.mxu0 0
    %119 = vmatprep.subr.bf16.mxu0 0
    %120 = vmatpush1.bf16.msra.mxu0 0
    %121 = vmatprep.subr.bf16.mxu0 0
    %122 = vmatpush1.bf16.msra.mxu0 0
    %123 = vmatprep.mubr.bf16.mxu0 0
    %124 = vmatmul.mubr.bf16.gmra.mrb[0].mxu0 %v89
    %v125 = vpop.f32.mrb[0].mxu0
    %v126 = vadd.f32 0.0, %v125
    %v127 = vpop.f32.mrb[0].mxu0
    %v128 = vpop.f32.mrb[0].mxu0
    %v129 = vpop.f32.mrb[0].mxu0
    %130 = vdwg.mxu0
    %v131 = vadd.f32 %v74, %v126
    %s132 = scalar_lea.vmem [#allocation3], 16
    %v133 = vld [vmem:[%s132] sm:$0x3]
    %v138 = vunpack.c.l.b16 %v62
    %v139 = vunpack.c.l.b16 %v63
    %v140 = vunpack.c.l.b16 %v64
    %v141 = vunpack.c.l.b16 %v65
    %v142 = vpack.c.b16 %v139, %v138
    %v143 = vpack.c.b16 %v141, %v140
    %146 = vmatprep.subr.bf16.mxu0 0
    %147 = vmatpush1.bf16.msra.mxu0 %v142
    %148 = vmatprep.subr.bf16.mxu0 0
    %149 = vmatpush1.bf16.msra.mxu0 %v143
    %150 = vmatprep.subr.bf16.mxu0 0
    %151 = vmatpush1.bf16.msra.mxu0 0
    %152 = vmatprep.subr.bf16.mxu0 0
    %153 = vmatpush1.bf16.msra.mxu0 0
    %154 = vmatprep.subr.bf16.mxu0 0
    %155 = vmatpush1.bf16.msra.mxu0 0
    %156 = vmatprep.subr.bf16.mxu0 0
    %157 = vmatpush1.bf16.msra.mxu0 0
    %158 = vmatprep.subr.bf16.mxu0 0
    %159 = vmatpush1.bf16.msra.mxu0 0
    %160 = vmatprep.subr.bf16.mxu0 0
    %161 = vmatpush1.bf16.msra.mxu0 0
    %162 = vmatprep.subr.bf16.mxu0 0
    %163 = vmatpush1.bf16.msra.mxu0 0
    %164 = vmatprep.subr.bf16.mxu0 0
    %165 = vmatpush1.bf16.msra.mxu0 0
    %166 = vmatprep.subr.bf16.mxu0 0
    %167 = vmatpush1.bf16.msra.mxu0 0
    %168 = vmatprep.subr.bf16.mxu0 0
    %169 = vmatpush1.bf16.msra.mxu0 0
    %170 = vmatprep.subr.bf16.mxu0 0
    %171 = vmatpush1.bf16.msra.mxu0 0
    %172 = vmatprep.subr.bf16.mxu0 0
    %173 = vmatpush1.bf16.msra.mxu0 0
    %174 = vmatprep.subr.bf16.mxu0 0
    %175 = vmatpush1.bf16.msra.mxu0 0
    %176 = vmatprep.subr.bf16.mxu0 0
    %177 = vmatpush1.bf16.msra.mxu0 0
    %178 = vmatprep.mubr.bf16.mxu0 0
    %179 = vmatmul.mubr.bf16.gmra.mrb[0].mxu0 %v89
    %v180 = vpop.f32.mrb[0].mxu0
    %v181 = vadd.f32 0.0, %v180
    %v182 = vpop.f32.mrb[0].mxu0
    %v183 = vpop.f32.mrb[0].mxu0
    %v184 = vpop.f32.mrb[0].mxu0
    %185 = vdwg.mxu0
    %v186 = vadd.f32 %v133, %v181
    %v188 = vlaneseq
    %v189 = vshrl.u32 %v188, 7
    %v190 = vsub.s32 0, %v189
    %v191 = vrot.slane %v71, %v190
    %v197 = vunpack.c.l.b16 %v67
    %v198 = vunpack.c.l.b16 %v68
    %v199 = vunpack.c.l.b16 %v69
    %v200 = vunpack.c.l.b16 %v70
    %v201 = vpack.c.b16 %v198, %v197
    %v202 = vpack.c.b16 %v200, %v199
    %205 = vmatprep.subr.bf16.mxu0 0
    %206 = vmatpush1.bf16.msra.mxu0 %v201
    %207 = vmatprep.subr.bf16.mxu0 0
    %208 = vmatpush1.bf16.msra.mxu0 %v202
    %209 = vmatprep.subr.bf16.mxu0 0
    %210 = vmatpush1.bf16.msra.mxu0 0
    %211 = vmatprep.subr.bf16.mxu0 0
    %212 = vmatpush1.bf16.msra.mxu0 0
    %213 = vmatprep.subr.bf16.mxu0 0
    %214 = vmatpush1.bf16.msra.mxu0 0
    %215 = vmatprep.subr.bf16.mxu0 0
    %216 = vmatpush1.bf16.msra.mxu0 0
    %217 = vmatprep.subr.bf16.mxu0 0
    %218 = vmatpush1.bf16.msra.mxu0 0
    %219 = vmatprep.subr.bf16.mxu0 0
    %220 = vmatpush1.bf16.msra.mxu0 0
    %221 = vmatprep.subr.bf16.mxu0 0
    %222 = vmatpush1.bf16.msra.mxu0 0
    %223 = vmatprep.subr.bf16.mxu0 0
    %224 = vmatpush1.bf16.msra.mxu0 0
    %225 = vmatprep.subr.bf16.mxu0 0
    %226 = vmatpush1.bf16.msra.mxu0 0
    %227 = vmatprep.subr.bf16.mxu0 0
    %228 = vmatpush1.bf16.msra.mxu0 0
    %229 = vmatprep.subr.bf16.mxu0 0
    %230 = vmatpush1.bf16.msra.mxu0 0
    %231 = vmatprep.subr.bf16.mxu0 0
    %232 = vmatpush1.bf16.msra.mxu0 0
    %233 = vmatprep.subr.bf16.mxu0 0
    %234 = vmatpush1.bf16.msra.mxu0 0
    %235 = vmatprep.subr.bf16.mxu0 0
    %236 = vmatpush1.bf16.msra.mxu0 0
    %237 = vmatprep.mubr.bf16.mxu0 0
    %238 = vmatmul.mubr.bf16.gmra.mrb[0].mxu0 %v89
    %v239 = vpop.f32.mrb[0].mxu0
    %v240 = vadd.f32 %v191, %v239
    %v241 = vpop.f32.mrb[0].mxu0
    %v242 = vpop.f32.mrb[0].mxu0
    %v243 = vpop.f32.mrb[0].mxu0
    %244 = vdwg.mxu0
    %v245 = vxor.u32 %v131, 2147483648
    %v246 = vmul.f32 %v245, 1.442695
    %v247 = vpow.pop %v246
    %v248 = vadd.f32 %v247, 1.0
    %v249 = vrcp.pop %v248
    %v250 = vmul.f32 1.0, %v249
    %v251 = vxor.u32 %v186, 2147483648
    %v252 = vmul.f32 %v251, 1.442695
    %v253 = vpow.pop %v252
    %v254 = vadd.f32 %v253, 1.0
    %v255 = vrcp.pop %v254
    %v256 = vmul.f32 1.0, %v255
    %s257 = scalar_lea.vmem [#allocation3], 32
    %v258 = vld [vmem:[%s257] sm:$0x3]
    %v259 = vmul.f32 %v250, %v240
    %v260 = vadd.f32 %v258, %v259
    %v261 = vtanh.pop %v260
    %v262 = vsub.f32 1.0, %v256
    %v263 = vmul.f32 %v262, %v261
    %v264 = vmul.f32 %v256, %v72
    %v265 = vadd.f32 %v263, %v264
    %vm266 = vcmask 254976
    %267 = vst.msk [vmem:[#allocation8] sm:$0x3] %vm266, %v265
    %v268 = vpack.c.bf16 %v265, %v265
    %s269 = scalar_lea.vmem [#allocation3], 2
    %v270 = vld [vmem:[%s269] sm:$0x3]
    %v272 = vsel %vm87, %v268, 0
    %274 = vmatprep.subr.bf16.mxu0 0
    %275 = vmatpush1.bf16.msra.mxu0 %v83
    %276 = vmatprep.subr.bf16.mxu0 0
    %277 = vmatpush1.bf16.msra.mxu0 %v84
    %278 = vmatprep.subr.bf16.mxu0 0
    %279 = vmatpush1.bf16.msra.mxu0 0
    %280 = vmatprep.subr.bf16.mxu0 0
    %281 = vmatpush1.bf16.msra.mxu0 0
    %282 = vmatprep.subr.bf16.mxu0 0
    %283 = vmatpush1.bf16.msra.mxu0 0
    %284 = vmatprep.subr.bf16.mxu0 0
    %285 = vmatpush1.bf16.msra.mxu0 0
    %286 = vmatprep.subr.bf16.mxu0 0
    %287 = vmatpush1.bf16.msra.mxu0 0
    %288 = vmatprep.subr.bf16.mxu0 0
    %289 = vmatpush1.bf16.msra.mxu0 0
    %290 = vmatprep.subr.bf16.mxu0 0
    %291 = vmatpush1.bf16.msra.mxu0 0
    %292 = vmatprep.subr.bf16.mxu0 0
    %293 = vmatpush1.bf16.msra.mxu0 0
    %294 = vmatprep.subr.bf16.mxu0 0
    %295 = vmatpush1.bf16.msra.mxu0 0
    %296 = vmatprep.subr.bf16.mxu0 0
    %297 = vmatpush1.bf16.msra.mxu0 0
    %298 = vmatprep.subr.bf16.mxu0 0
    %299 = vmatpush1.bf16.msra.mxu0 0
    %300 = vmatprep.subr.bf16.mxu0 0
    %301 = vmatpush1.bf16.msra.mxu0 0
    %302 = vmatprep.subr.bf16.mxu0 0
    %303 = vmatpush1.bf16.msra.mxu0 0
    %304 = vmatprep.subr.bf16.mxu0 0
    %305 = vmatpush1.bf16.msra.mxu0 0
    %306 = vmatprep.mubr.bf16.mxu0 0
    %307 = vmatmul.mubr.bf16.gmra.mrb[0].mxu0 %v272
    %v308 = vpop.f32.mrb[0].mxu0
    %v309 = vadd.f32 0.0, %v308
    %v310 = vpop.f32.mrb[0].mxu0
    %v311 = vpop.f32.mrb[0].mxu0
    %v312 = vpop.f32.mrb[0].mxu0
    %313 = vdwg.mxu0
    %v314 = vadd.f32 %v270, %v309
    %s315 = scalar_lea.vmem [#allocation3], 18
    %v316 = vld [vmem:[%s315] sm:$0x3]
    %317 = vmatprep.subr.bf16.mxu0 0
    %318 = vmatpush1.bf16.msra.mxu0 %v142
    %319 = vmatprep.subr.bf16.mxu0 0
    %320 = vmatpush1.bf16.msra.mxu0 %v143
    %321 = vmatprep.subr.bf16.mxu0 0
    %322 = vmatpush1.bf16.msra.mxu0 0
    %323 = vmatprep.subr.bf16.mxu0 0
    %324 = vmatpush1.bf16.msra.mxu0 0
    %325 = vmatprep.subr.bf16.mxu0 0
    %326 = vmatpush1.bf16.msra.mxu0 0
    %327 = vmatprep.subr.bf16.mxu0 0
    %328 = vmatpush1.bf16.msra.mxu0 0
    %329 = vmatprep.subr.bf16.mxu0 0
    %330 = vmatpush1.bf16.msra.mxu0 0
    %331 = vmatprep.subr.bf16.mxu0 0
    %332 = vmatpush1.bf16.msra.mxu0 0
    %333 = vmatprep.subr.bf16.mxu0 0
    %334 = vmatpush1.bf16.msra.mxu0 0
    %335 = vmatprep.subr.bf16.mxu0 0
    %336 = vmatpush1.bf16.msra.mxu0 0
    %337 = vmatprep.subr.bf16.mxu0 0
    %338 = vmatpush1.bf16.msra.mxu0 0
    %339 = vmatprep.subr.bf16.mxu0 0
    %340 = vmatpush1.bf16.msra.mxu0 0
    %341 = vmatprep.subr.bf16.mxu0 0
    %342 = vmatpush1.bf16.msra.mxu0 0
    %343 = vmatprep.subr.bf16.mxu0 0
    %344 = vmatpush1.bf16.msra.mxu0 0
    %345 = vmatprep.subr.bf16.mxu0 0
    %346 = vmatpush1.bf16.msra.mxu0 0
    %347 = vmatprep.subr.bf16.mxu0 0
    %348 = vmatpush1.bf16.msra.mxu0 0
    %349 = vmatprep.mubr.bf16.mxu0 0
    %350 = vmatmul.mubr.bf16.gmra.mrb[0].mxu0 %v272
    %v351 = vpop.f32.mrb[0].mxu0
    %v352 = vadd.f32 0.0, %v351
    %v353 = vpop.f32.mrb[0].mxu0
    %v354 = vpop.f32.mrb[0].mxu0
    %v355 = vpop.f32.mrb[0].mxu0
    %356 = vdwg.mxu0
    %v357 = vadd.f32 %v316, %v352
    %358 = vmatprep.subr.bf16.mxu0 0
    %359 = vmatpush1.bf16.msra.mxu0 %v201
    %360 = vmatprep.subr.bf16.mxu0 0
    %361 = vmatpush1.bf16.msra.mxu0 %v202
    %362 = vmatprep.subr.bf16.mxu0 0
    %363 = vmatpush1.bf16.msra.mxu0 0
    %364 = vmatprep.subr.bf16.mxu0 0
    %365 = vmatpush1.bf16.msra.mxu0 0
    %366 = vmatprep.subr.bf16.mxu0 0
    %367 = vmatpush1.bf16.msra.mxu0 0
    %368 = vmatprep.subr.bf16.mxu0 0
    %369 = vmatpush1.bf16.msra.mxu0 0
    %370 = vmatprep.subr.bf16.mxu0 0
    %371 = vmatpush1.bf16.msra.mxu0 0
    %372 = vmatprep.subr.bf16.mxu0 0
    %373 = vmatpush1.bf16.msra.mxu0 0
    %374 = vmatprep.subr.bf16.mxu0 0
    %375 = vmatpush1.bf16.msra.mxu0 0
    %376 = vmatprep.subr.bf16.mxu0 0
    %377 = vmatpush1.bf16.msra.mxu0 0
    %378 = vmatprep.subr.bf16.mxu0 0
    %379 = vmatpush1.bf16.msra.mxu0 0
    %380 = vmatprep.subr.bf16.mxu0 0
    %381 = vmatpush1.bf16.msra.mxu0 0
    %382 = vmatprep.subr.bf16.mxu0 0
    %383 = vmatpush1.bf16.msra.mxu0 0
    %384 = vmatprep.subr.bf16.mxu0 0
    %385 = vmatpush1.bf16.msra.mxu0 0
    %386 = vmatprep.subr.bf16.mxu0 0
    %387 = vmatpush1.bf16.msra.mxu0 0
    %388 = vmatprep.subr.bf16.mxu0 0
    %389 = vmatpush1.bf16.msra.mxu0 0
    %390 = vmatprep.mubr.bf16.mxu0 0
    %391 = vmatmul.mubr.bf16.gmra.mrb[0].mxu0 %v272
    %v392 = vpop.f32.mrb[0].mxu0
    %v393 = vadd.f32 %v191, %v392
    %v394 = vpop.f32.mrb[0].mxu0
    %v395 = vpop.f32.mrb[0].mxu0
    %v396 = vpop.f32.mrb[0].mxu0
    %397 = vdwg.mxu0
    %v398 = vxor.u32 %v314, 2147483648
    %v399 = vmul.f32 %v398, 1.442695
    %v400 = vpow.pop %v399
    %v401 = vadd.f32 %v400, 1.0
    %v402 = vrcp.pop %v401
    %v403 = vmul.f32 1.0, %v402
    %v404 = vxor.u32 %v357, 2147483648
    %v405 = vmul.f32 %v404, 1.442695
    %v406 = vpow.pop %v405
    %v407 = vadd.f32 %v406, 1.0
    %v408 = vrcp.pop %v407
    %v409 = vmul.f32 1.0, %v408
    %s410 = scalar_lea.vmem [#allocation3], 34
    %v411 = vld [vmem:[%s410] sm:$0x3]
    %v412 = vmul.f32 %v403, %v393
    %v413 = vadd.f32 %v411, %v412
    %v414 = vtanh.pop %v413
    %v415 = vsub.f32 1.0, %v409
    %v416 = vmul.f32 %v415, %v414
    %v417 = vmul.f32 %v409, %v265
    %v418 = vadd.f32 %v416, %v417
    %s419 = scalar_lea.vmem [#allocation8], 2
    %420 = vst.msk [vmem:[%s419] sm:$0x3] %vm266, %v418
    %v421 = vpack.c.bf16 %v418, %v418
    %s422 = scalar_lea.vmem [#allocation3], 4
    %v423 = vld [vmem:[%s422] sm:$0x3]
    %v425 = vsel %vm87, %v421, 0
    %427 = vmatprep.subr.bf16.mxu0 0
    %428 = vmatpush1.bf16.msra.mxu0 %v83
    %429 = vmatprep.subr.bf16.mxu0 0
    %430 = vmatpush1.bf16.msra.mxu0 %v84
    %431 = vmatprep.subr.bf16.mxu0 0
    %432 = vmatpush1.bf16.msra.mxu0 0
    %433 = vmatprep.subr.bf16.mxu0 0
    %434 = vmatpush1.bf16.msra.mxu0 0
    %435 = vmatprep.subr.bf16.mxu0 0
    %436 = vmatpush1.bf16.msra.mxu0 0
    %437 = vmatprep.subr.bf16.mxu0 0
    %438 = vmatpush1.bf16.msra.mxu0 0
    %439 = vmatprep.subr.bf16.mxu0 0
    %440 = vmatpush1.bf16.msra.mxu0 0
    %441 = vmatprep.subr.bf16.mxu0 0
    %442 = vmatpush1.bf16.msra.mxu0 0
    %443 = vmatprep.subr.bf16.mxu0 0
    %444 = vmatpush1.bf16.msra.mxu0 0
    %445 = vmatprep.subr.bf16.mxu0 0
    %446 = vmatpush1.bf16.msra.mxu0 0
    %447 = vmatprep.subr.bf16.mxu0 0
    %448 = vmatpush1.bf16.msra.mxu0 0
    %449 = vmatprep.subr.bf16.mxu0 0
    %450 = vmatpush1.bf16.msra.mxu0 0
    %451 = vmatprep.subr.bf16.mxu0 0
    %452 = vmatpush1.bf16.msra.mxu0 0
    %453 = vmatprep.subr.bf16.mxu0 0
    %454 = vmatpush1.bf16.msra.mxu0 0
    %455 = vmatprep.subr.bf16.mxu0 0
    %456 = vmatpush1.bf16.msra.mxu0 0
    %457 = vmatprep.subr.bf16.mxu0 0
    %458 = vmatpush1.bf16.msra.mxu0 0
    %459 = vmatprep.mubr.bf16.mxu0 0
    %460 = vmatmul.mubr.bf16.gmra.mrb[0].mxu0 %v425
    %v461 = vpop.f32.mrb[0].mxu0
    %v462 = vadd.f32 0.0, %v461
    %v463 = vpop.f32.mrb[0].mxu0
    %v464 = vpop.f32.mrb[0].mxu0
    %v465 = vpop.f32.mrb[0].mxu0
    %466 = vdwg.mxu0
    %v467 = vadd.f32 %v423, %v462
    %s468 = scalar_lea.vmem [#allocation3], 20
    %v469 = vld [vmem:[%s468] sm:$0x3]
    %470 = vmatprep.subr.bf16.mxu0 0
    %471 = vmatpush1.bf16.msra.mxu0 %v142
    %472 = vmatprep.subr.bf16.mxu0 0
    %473 = vmatpush1.bf16.msra.mxu0 %v143
    %474 = vmatprep.subr.bf16.mxu0 0
    %475 = vmatpush1.bf16.msra.mxu0 0
    %476 = vmatprep.subr.bf16.mxu0 0
    %477 = vmatpush1.bf16.msra.mxu0 0
    %478 = vmatprep.subr.bf16.mxu0 0
    %479 = vmatpush1.bf16.msra.mxu0 0
    %480 = vmatprep.subr.bf16.mxu0 0
    %481 = vmatpush1.bf16.msra.mxu0 0
    %482 = vmatprep.subr.bf16.mxu0 0
    %483 = vmatpush1.bf16.msra.mxu0 0
    %484 = vmatprep.subr.bf16.mxu0 0
    %485 = vmatpush1.bf16.msra.mxu0 0
    %486 = vmatprep.subr.bf16.mxu0 0
    %487 = vmatpush1.bf16.msra.mxu0 0
    %488 = vmatprep.subr.bf16.mxu0 0
    %489 = vmatpush1.bf16.msra.mxu0 0
    %490 = vmatprep.subr.bf16.mxu0 0
    %491 = vmatpush1.bf16.msra.mxu0 0
    %492 = vmatprep.subr.bf16.mxu0 0
    %493 = vmatpush1.bf16.msra.mxu0 0
    %494 = vmatprep.subr.bf16.mxu0 0
    %495 = vmatpush1.bf16.msra.mxu0 0
    %496 = vmatprep.subr.bf16.mxu0 0
    %497 = vmatpush1.bf16.msra.mxu0 0
    %498 = vmatprep.subr.bf16.mxu0 0
    %499 = vmatpush1.bf16.msra.mxu0 0
    %500 = vmatprep.subr.bf16.mxu0 0
    %501 = vmatpush1.bf16.msra.mxu0 0
    %502 = vmatprep.mubr.bf16.mxu0 0
    %503 = vmatmul.mubr.bf16.gmra.mrb[0].mxu0 %v425
    %v504 = vpop.f32.mrb[0].mxu0
    %v505 = vadd.f32 0.0, %v504
    %v506 = vpop.f32.mrb[0].mxu0
    %v507 = vpop.f32.mrb[0].mxu0
    %v508 = vpop.f32.mrb[0].mxu0
    %509 = vdwg.mxu0
    %v510 = vadd.f32 %v469, %v505
    %511 = vmatprep.subr.bf16.mxu0 0
    %512 = vmatpush1.bf16.msra.mxu0 %v201
    %513 = vmatprep.subr.bf16.mxu0 0
    %514 = vmatpush1.bf16.msra.mxu0 %v202
    %515 = vmatprep.subr.bf16.mxu0 0
    %516 = vmatpush1.bf16.msra.mxu0 0
    %517 = vmatprep.subr.bf16.mxu0 0
    %518 = vmatpush1.bf16.msra.mxu0 0
    %519 = vmatprep.subr.bf16.mxu0 0
    %520 = vmatpush1.bf16.msra.mxu0 0
    %521 = vmatprep.subr.bf16.mxu0 0
    %522 = vmatpush1.bf16.msra.mxu0 0
    %523 = vmatprep.subr.bf16.mxu0 0
    %524 = vmatpush1.bf16.msra.mxu0 0
    %525 = vmatprep.subr.bf16.mxu0 0
    %526 = vmatpush1.bf16.msra.mxu0 0
    %527 = vmatprep.subr.bf16.mxu0 0
    %528 = vmatpush1.bf16.msra.mxu0 0
    %529 = vmatprep.subr.bf16.mxu0 0
    %530 = vmatpush1.bf16.msra.mxu0 0
    %531 = vmatprep.subr.bf16.mxu0 0
    %532 = vmatpush1.bf16.msra.mxu0 0
    %533 = vmatprep.subr.bf16.mxu0 0
    %534 = vmatpush1.bf16.msra.mxu0 0
    %535 = vmatprep.subr.bf16.mxu0 0
    %536 = vmatpush1.bf16.msra.mxu0 0
    %537 = vmatprep.subr.bf16.mxu0 0
    %538 = vmatpush1.bf16.msra.mxu0 0
    %539 = vmatprep.subr.bf16.mxu0 0
    %540 = vmatpush1.bf16.msra.mxu0 0
    %541 = vmatprep.subr.bf16.mxu0 0
    %542 = vmatpush1.bf16.msra.mxu0 0
    %543 = vmatprep.mubr.bf16.mxu0 0
    %544 = vmatmul.mubr.bf16.gmra.mrb[0].mxu0 %v425
    %v545 = vpop.f32.mrb[0].mxu0
    %v546 = vadd.f32 %v191, %v545
    %v547 = vpop.f32.mrb[0].mxu0
    %v548 = vpop.f32.mrb[0].mxu0
    %v549 = vpop.f32.mrb[0].mxu0
    %550 = vdwg.mxu0
    %v551 = vxor.u32 %v467, 2147483648
    %v552 = vmul.f32 %v551, 1.442695
    %v553 = vpow.pop %v552
    %v554 = vadd.f32 %v553, 1.0
    %v555 = vrcp.pop %v554
    %v556 = vmul.f32 1.0, %v555
    %v557 = vxor.u32 %v510, 2147483648
    %v558 = vmul.f32 %v557, 1.442695
    %v559 = vpow.pop %v558
    %v560 = vadd.f32 %v559, 1.0
    %v561 = vrcp.pop %v560
    %v562 = vmul.f32 1.0, %v561
    %s563 = scalar_lea.vmem [#allocation3], 36
    %v564 = vld [vmem:[%s563] sm:$0x3]
    %v565 = vmul.f32 %v556, %v546
    %v566 = vadd.f32 %v564, %v565
    %v567 = vtanh.pop %v566
    %v568 = vsub.f32 1.0, %v562
    %v569 = vmul.f32 %v568, %v567
    %v570 = vmul.f32 %v562, %v418
    %v571 = vadd.f32 %v569, %v570
    %s572 = scalar_lea.vmem [#allocation8], 4
    %573 = vst.msk [vmem:[%s572] sm:$0x3] %vm266, %v571
    %v574 = vpack.c.bf16 %v571, %v571
    %s575 = scalar_lea.vmem [#allocation3], 6
    %v576 = vld [vmem:[%s575] sm:$0x3]
    %v578 = vsel %vm87, %v574, 0
    %580 = vmatprep.subr.bf16.mxu0 0
    %581 = vmatpush1.bf16.msra.mxu0 %v83
    %582 = vmatprep.subr.bf16.mxu0 0
    %583 = vmatpush1.bf16.msra.mxu0 %v84
    %584 = vmatprep.subr.bf16.mxu0 0
    %585 = vmatpush1.bf16.msra.mxu0 0
    %586 = vmatprep.subr.bf16.mxu0 0
    %587 = vmatpush1.bf16.msra.mxu0 0
    %588 = vmatprep.subr.bf16.mxu0 0
    %589 = vmatpush1.bf16.msra.mxu0 0
    %590 = vmatprep.subr.bf16.mxu0 0
    %591 = vmatpush1.bf16.msra.mxu0 0
    %592 = vmatprep.subr.bf16.mxu0 0
    %593 = vmatpush1.bf16.msra.mxu0 0
    %594 = vmatprep.subr.bf16.mxu0 0
    %595 = vmatpush1.bf16.msra.mxu0 0
    %596 = vmatprep.subr.bf16.mxu0 0
    %597 = vmatpush1.bf16.msra.mxu0 0
    %598 = vmatprep.subr.bf16.mxu0 0
    %599 = vmatpush1.bf16.msra.mxu0 0
    %600 = vmatprep.subr.bf16.mxu0 0
    %601 = vmatpush1.bf16.msra.mxu0 0
    %602 = vmatprep.subr.bf16.mxu0 0
    %603 = vmatpush1.bf16.msra.mxu0 0
    %604 = vmatprep.subr.bf16.mxu0 0
    %605 = vmatpush1.bf16.msra.mxu0 0
    %606 = vmatprep.subr.bf16.mxu0 0
    %607 = vmatpush1.bf16.msra.mxu0 0
    %608 = vmatprep.subr.bf16.mxu0 0
    %609 = vmatpush1.bf16.msra.mxu0 0
    %610 = vmatprep.subr.bf16.mxu0 0
    %611 = vmatpush1.bf16.msra.mxu0 0
    %612 = vmatprep.mubr.bf16.mxu0 0
    %613 = vmatmul.mubr.bf16.gmra.mrb[0].mxu0 %v578
    %v614 = vpop.f32.mrb[0].mxu0
    %v615 = vadd.f32 0.0, %v614
    %v616 = vpop.f32.mrb[0].mxu0
    %v617 = vpop.f32.mrb[0].mxu0
    %v618 = vpop.f32.mrb[0].mxu0
    %619 = vdwg.mxu0
    %v620 = vadd.f32 %v576, %v615
    %s621 = scalar_lea.vmem [#allocation3], 22
    %v622 = vld [vmem:[%s621] sm:$0x3]
    %623 = vmatprep.subr.bf16.mxu0 0
    %624 = vmatpush1.bf16.msra.mxu0 %v142
    %625 = vmatprep.subr.bf16.mxu0 0
    %626 = vmatpush1.bf16.msra.mxu0 %v143
    %627 = vmatprep.subr.bf16.mxu0 0
    %628 = vmatpush1.bf16.msra.mxu0 0
    %629 = vmatprep.subr.bf16.mxu0 0
    %630 = vmatpush1.bf16.msra.mxu0 0
    %631 = vmatprep.subr.bf16.mxu0 0
    %632 = vmatpush1.bf16.msra.mxu0 0
    %633 = vmatprep.subr.bf16.mxu0 0
    %634 = vmatpush1.bf16.msra.mxu0 0
    %635 = vmatprep.subr.bf16.mxu0 0
    %636 = vmatpush1.bf16.msra.mxu0 0
    %637 = vmatprep.subr.bf16.mxu0 0
    %638 = vmatpush1.bf16.msra.mxu0 0
    %639 = vmatprep.subr.bf16.mxu0 0
    %640 = vmatpush1.bf16.msra.mxu0 0
    %641 = vmatprep.subr.bf16.mxu0 0
    %642 = vmatpush1.bf16.msra.mxu0 0
    %643 = vmatprep.subr.bf16.mxu0 0
    %644 = vmatpush1.bf16.msra.mxu0 0
    %645 = vmatprep.subr.bf16.mxu0 0
    %646 = vmatpush1.bf16.msra.mxu0 0
    %647 = vmatprep.subr.bf16.mxu0 0
    %648 = vmatpush1.bf16.msra.mxu0 0
    %649 = vmatprep.subr.bf16.mxu0 0
    %650 = vmatpush1.bf16.msra.mxu0 0
    %651 = vmatprep.subr.bf16.mxu0 0
    %652 = vmatpush1.bf16.msra.mxu0 0
    %653 = vmatprep.subr.bf16.mxu0 0
    %654 = vmatpush1.bf16.msra.mxu0 0
    %655 = vmatprep.mubr.bf16.mxu0 0
    %656 = vmatmul.mubr.bf16.gmra.mrb[0].mxu0 %v578
    %v657 = vpop.f32.mrb[0].mxu0
    %v658 = vadd.f32 0.0, %v657
    %v659 = vpop.f32.mrb[0].mxu0
    %v660 = vpop.f32.mrb[0].mxu0
    %v661 = vpop.f32.mrb[0].mxu0
    %662 = vdwg.mxu0
    %v663 = vadd.f32 %v622, %v658
    %664 = vmatprep.subr.bf16.mxu0 0
    %665 = vmatpush1.bf16.msra.mxu0 %v201
    %666 = vmatprep.subr.bf16.mxu0 0
    %667 = vmatpush1.bf16.msra.mxu0 %v202
    %668 = vmatprep.subr.bf16.mxu0 0
    %669 = vmatpush1.bf16.msra.mxu0 0
    %670 = vmatprep.subr.bf16.mxu0 0
    %671 = vmatpush1.bf16.msra.mxu0 0
    %672 = vmatprep.subr.bf16.mxu0 0
    %673 = vmatpush1.bf16.msra.mxu0 0
    %674 = vmatprep.subr.bf16.mxu0 0
    %675 = vmatpush1.bf16.msra.mxu0 0
    %676 = vmatprep.subr.bf16.mxu0 0
    %677 = vmatpush1.bf16.msra.mxu0 0
    %678 = vmatprep.subr.bf16.mxu0 0
    %679 = vmatpush1.bf16.msra.mxu0 0
    %680 = vmatprep.subr.bf16.mxu0 0
    %681 = vmatpush1.bf16.msra.mxu0 0
    %682 = vmatprep.subr.bf16.mxu0 0
    %683 = vmatpush1.bf16.msra.mxu0 0
    %684 = vmatprep.subr.bf16.mxu0 0
    %685 = vmatpush1.bf16.msra.mxu0 0
    %686 = vmatprep.subr.bf16.mxu0 0
    %687 = vmatpush1.bf16.msra.mxu0 0
    %688 = vmatprep.subr.bf16.mxu0 0
    %689 = vmatpush1.bf16.msra.mxu0 0
    %690 = vmatprep.subr.bf16.mxu0 0
    %691 = vmatpush1.bf16.msra.mxu0 0
    %692 = vmatprep.subr.bf16.mxu0 0
    %693 = vmatpush1.bf16.msra.mxu0 0
    %694 = vmatprep.subr.bf16.mxu0 0
    %695 = vmatpush1.bf16.msra.mxu0 0
    %696 = vmatprep.mubr.bf16.mxu0 0
    %697 = vmatmul.mubr.bf16.gmra.mrb[0].mxu0 %v578
    %v698 = vpop.f32.mrb[0].mxu0
    %v699 = vadd.f32 %v191, %v698
    %v700 = vpop.f32.mrb[0].mxu0
    %v701 = vpop.f32.mrb[0].mxu0
    %v702 = vpop.f32.mrb[0].mxu0
    %703 = vdwg.mxu0
    %v704 = vxor.u32 %v620, 2147483648
    %v705 = vmul.f32 %v704, 1.442695
    %v706 = vpow.pop %v705
    %v707 = vadd.f32 %v706, 1.0
    %v708 = vrcp.pop %v707
    %v709 = vmul.f32 1.0, %v708
    %v710 = vxor.u32 %v663, 2147483648
    %v711 = vmul.f32 %v710, 1.442695
    %v712 = vpow.pop %v711
    %v713 = vadd.f32 %v712, 1.0
    %v714 = vrcp.pop %v713
    %v715 = vmul.f32 1.0, %v714
    %s716 = scalar_lea.vmem [#allocation3], 38
    %v717 = vld [vmem:[%s716] sm:$0x3]
    %v718 = vmul.f32 %v709, %v699
    %v719 = vadd.f32 %v717, %v718
    %v720 = vtanh.pop %v719
    %v721 = vsub.f32 1.0, %v715
    %v722 = vmul.f32 %v721, %v720
    %v723 = vmul.f32 %v715, %v571
    %v724 = vadd.f32 %v722, %v723
    %s725 = scalar_lea.vmem [#allocation8], 6
    %726 = vst.msk [vmem:[%s725] sm:$0x3] %vm266, %v724
    %v727 = vpack.c.bf16 %v724, %v724
    %s728 = scalar_lea.vmem [#allocation3], 8
    %v729 = vld [vmem:[%s728] sm:$0x3]
    %v731 = vsel %vm87, %v727, 0
    %733 = vmatprep.subr.bf16.mxu0 0
    %734 = vmatpush1.bf16.msra.mxu0 %v83
    %735 = vmatprep.subr.bf16.mxu0 0
    %736 = vmatpush1.bf16.msra.mxu0 %v84
    %737 = vmatprep.subr.bf16.mxu0 0
    %738 = vmatpush1.bf16.msra.mxu0 0
    %739 = vmatprep.subr.bf16.mxu0 0
    %740 = vmatpush1.bf16.msra.mxu0 0
    %741 = vmatprep.subr.bf16.mxu0 0
    %742 = vmatpush1.bf16.msra.mxu0 0
    %743 = vmatprep.subr.bf16.mxu0 0
    %744 = vmatpush1.bf16.msra.mxu0 0
    %745 = vmatprep.subr.bf16.mxu0 0
    %746 = vmatpush1.bf16.msra.mxu0 0
    %747 = vmatprep.subr.bf16.mxu0 0
    %748 = vmatpush1.bf16.msra.mxu0 0
    %749 = vmatprep.subr.bf16.mxu0 0
    %750 = vmatpush1.bf16.msra.mxu0 0
    %751 = vmatprep.subr.bf16.mxu0 0
    %752 = vmatpush1.bf16.msra.mxu0 0
    %753 = vmatprep.subr.bf16.mxu0 0
    %754 = vmatpush1.bf16.msra.mxu0 0
    %755 = vmatprep.subr.bf16.mxu0 0
    %756 = vmatpush1.bf16.msra.mxu0 0
    %757 = vmatprep.subr.bf16.mxu0 0
    %758 = vmatpush1.bf16.msra.mxu0 0
    %759 = vmatprep.subr.bf16.mxu0 0
    %760 = vmatpush1.bf16.msra.mxu0 0
    %761 = vmatprep.subr.bf16.mxu0 0
    %762 = vmatpush1.bf16.msra.mxu0 0
    %763 = vmatprep.subr.bf16.mxu0 0
    %764 = vmatpush1.bf16.msra.mxu0 0
    %765 = vmatprep.mubr.bf16.mxu0 0
    %766 = vmatmul.mubr.bf16.gmra.mrb[0].mxu0 %v731
    %v767 = vpop.f32.mrb[0].mxu0
    %v768 = vadd.f32 0.0, %v767
    %v769 = vpop.f32.mrb[0].mxu0
    %v770 = vpop.f32.mrb[0].mxu0
    %v771 = vpop.f32.mrb[0].mxu0
    %772 = vdwg.mxu0
    %v773 = vadd.f32 %v729, %v768
    %s774 = scalar_lea.vmem [#allocation3], 24
    %v775 = vld [vmem:[%s774] sm:$0x3]
    %776 = vmatprep.subr.bf16.mxu0 0
    %777 = vmatpush1.bf16.msra.mxu0 %v142
    %778 = vmatprep.subr.bf16.mxu0 0
    %779 = vmatpush1.bf16.msra.mxu0 %v143
    %780 = vmatprep.subr.bf16.mxu0 0
    %781 = vmatpush1.bf16.msra.mxu0 0
    %782 = vmatprep.subr.bf16.mxu0 0
    %783 = vmatpush1.bf16.msra.mxu0 0
    %784 = vmatprep.subr.bf16.mxu0 0
    %785 = vmatpush1.bf16.msra.mxu0 0
    %786 = vmatprep.subr.bf16.mxu0 0
    %787 = vmatpush1.bf16.msra.mxu0 0
    %788 = vmatprep.subr.bf16.mxu0 0
    %789 = vmatpush1.bf16.msra.mxu0 0
    %790 = vmatprep.subr.bf16.mxu0 0
    %791 = vmatpush1.bf16.msra.mxu0 0
    %792 = vmatprep.subr.bf16.mxu0 0
    %793 = vmatpush1.bf16.msra.mxu0 0
    %794 = vmatprep.subr.bf16.mxu0 0
    %795 = vmatpush1.bf16.msra.mxu0 0
    %796 = vmatprep.subr.bf16.mxu0 0
    %797 = vmatpush1.bf16.msra.mxu0 0
    %798 = vmatprep.subr.bf16.mxu0 0
    %799 = vmatpush1.bf16.msra.mxu0 0
    %800 = vmatprep.subr.bf16.mxu0 0
    %801 = vmatpush1.bf16.msra.mxu0 0
    %802 = vmatprep.subr.bf16.mxu0 0
    %803 = vmatpush1.bf16.msra.mxu0 0
    %804 = vmatprep.subr.bf16.mxu0 0
    %805 = vmatpush1.bf16.msra.mxu0 0
    %806 = vmatprep.subr.bf16.mxu0 0
    %807 = vmatpush1.bf16.msra.mxu0 0
    %808 = vmatprep.mubr.bf16.mxu0 0
    %809 = vmatmul.mubr.bf16.gmra.mrb[0].mxu0 %v731
    %v810 = vpop.f32.mrb[0].mxu0
    %v811 = vadd.f32 0.0, %v810
    %v812 = vpop.f32.mrb[0].mxu0
    %v813 = vpop.f32.mrb[0].mxu0
    %v814 = vpop.f32.mrb[0].mxu0
    %815 = vdwg.mxu0
    %v816 = vadd.f32 %v775, %v811
    %817 = vmatprep.subr.bf16.mxu0 0
    %818 = vmatpush1.bf16.msra.mxu0 %v201
    %819 = vmatprep.subr.bf16.mxu0 0
    %820 = vmatpush1.bf16.msra.mxu0 %v202
    %821 = vmatprep.subr.bf16.mxu0 0
    %822 = vmatpush1.bf16.msra.mxu0 0
    %823 = vmatprep.subr.bf16.mxu0 0
    %824 = vmatpush1.bf16.msra.mxu0 0
    %825 = vmatprep.subr.bf16.mxu0 0
    %826 = vmatpush1.bf16.msra.mxu0 0
    %827 = vmatprep.subr.bf16.mxu0 0
    %828 = vmatpush1.bf16.msra.mxu0 0
    %829 = vmatprep.subr.bf16.mxu0 0
    %830 = vmatpush1.bf16.msra.mxu0 0
    %831 = vmatprep.subr.bf16.mxu0 0
    %832 = vmatpush1.bf16.msra.mxu0 0
    %833 = vmatprep.subr.bf16.mxu0 0
    %834 = vmatpush1.bf16.msra.mxu0 0
    %835 = vmatprep.subr.bf16.mxu0 0
    %836 = vmatpush1.bf16.msra.mxu0 0
    %837 = vmatprep.subr.bf16.mxu0 0
    %838 = vmatpush1.bf16.msra.mxu0 0
    %839 = vmatprep.subr.bf16.mxu0 0
    %840 = vmatpush1.bf16.msra.mxu0 0
    %841 = vmatprep.subr.bf16.mxu0 0
    %842 = vmatpush1.bf16.msra.mxu0 0
    %843 = vmatprep.subr.bf16.mxu0 0
    %844 = vmatpush1.bf16.msra.mxu0 0
    %845 = vmatprep.subr.bf16.mxu0 0
    %846 = vmatpush1.bf16.msra.mxu0 0
    %847 = vmatprep.subr.bf16.mxu0 0
    %848 = vmatpush1.bf16.msra.mxu0 0
    %849 = vmatprep.mubr.bf16.mxu0 0
    %850 = vmatmul.mubr.bf16.gmra.mrb[0].mxu0 %v731
    %v851 = vpop.f32.mrb[0].mxu0
    %v852 = vadd.f32 %v191, %v851
    %v853 = vpop.f32.mrb[0].mxu0
    %v854 = vpop.f32.mrb[0].mxu0
    %v855 = vpop.f32.mrb[0].mxu0
    %856 = vdwg.mxu0
    %v857 = vxor.u32 %v773, 2147483648
    %v858 = vmul.f32 %v857, 1.442695
    %v859 = vpow.pop %v858
    %v860 = vadd.f32 %v859, 1.0
    %v861 = vrcp.pop %v860
    %v862 = vmul.f32 1.0, %v861
    %v863 = vxor.u32 %v816, 2147483648
    %v864 = vmul.f32 %v863, 1.442695
    %v865 = vpow.pop %v864
    %v866 = vadd.f32 %v865, 1.0
    %v867 = vrcp.pop %v866
    %v868 = vmul.f32 1.0, %v867
    %s869 = scalar_lea.vmem [#allocation3], 40
    %v870 = vld [vmem:[%s869] sm:$0x3]
    %v871 = vmul.f32 %v862, %v852
    %v872 = vadd.f32 %v870, %v871
    %v873 = vtanh.pop %v872
    %v874 = vsub.f32 1.0, %v868
    %v875 = vmul.f32 %v874, %v873
    %v876 = vmul.f32 %v868, %v724
    %v877 = vadd.f32 %v875, %v876
    %s878 = scalar_lea.vmem [#allocation8], 8
    %879 = vst.msk [vmem:[%s878] sm:$0x3] %vm266, %v877
    %v880 = vpack.c.bf16 %v877, %v877
    %s881 = scalar_lea.vmem [#allocation3], 10
    %v882 = vld [vmem:[%s881] sm:$0x3]
    %v884 = vsel %vm87, %v880, 0
    %886 = vmatprep.subr.bf16.mxu0 0
    %887 = vmatpush1.bf16.msra.mxu0 %v83
    %888 = vmatprep.subr.bf16.mxu0 0
    %889 = vmatpush1.bf16.msra.mxu0 %v84
    %890 = vmatprep.subr.bf16.mxu0 0
    %891 = vmatpush1.bf16.msra.mxu0 0
    %892 = vmatprep.subr.bf16.mxu0 0
    %893 = vmatpush1.bf16.msra.mxu0 0
    %894 = vmatprep.subr.bf16.mxu0 0
    %895 = vmatpush1.bf16.msra.mxu0 0
    %896 = vmatprep.subr.bf16.mxu0 0
    %897 = vmatpush1.bf16.msra.mxu0 0
    %898 = vmatprep.subr.bf16.mxu0 0
    %899 = vmatpush1.bf16.msra.mxu0 0
    %900 = vmatprep.subr.bf16.mxu0 0
    %901 = vmatpush1.bf16.msra.mxu0 0
    %902 = vmatprep.subr.bf16.mxu0 0
    %903 = vmatpush1.bf16.msra.mxu0 0
    %904 = vmatprep.subr.bf16.mxu0 0
    %905 = vmatpush1.bf16.msra.mxu0 0
    %906 = vmatprep.subr.bf16.mxu0 0
    %907 = vmatpush1.bf16.msra.mxu0 0
    %908 = vmatprep.subr.bf16.mxu0 0
    %909 = vmatpush1.bf16.msra.mxu0 0
    %910 = vmatprep.subr.bf16.mxu0 0
    %911 = vmatpush1.bf16.msra.mxu0 0
    %912 = vmatprep.subr.bf16.mxu0 0
    %913 = vmatpush1.bf16.msra.mxu0 0
    %914 = vmatprep.subr.bf16.mxu0 0
    %915 = vmatpush1.bf16.msra.mxu0 0
    %916 = vmatprep.subr.bf16.mxu0 0
    %917 = vmatpush1.bf16.msra.mxu0 0
    %918 = vmatprep.mubr.bf16.mxu0 0
    %919 = vmatmul.mubr.bf16.gmra.mrb[0].mxu0 %v884
    %v920 = vpop.f32.mrb[0].mxu0
    %v921 = vadd.f32 0.0, %v920
    %v922 = vpop.f32.mrb[0].mxu0
    %v923 = vpop.f32.mrb[0].mxu0
    %v924 = vpop.f32.mrb[0].mxu0
    %925 = vdwg.mxu0
    %v926 = vadd.f32 %v882, %v921
    %s927 = scalar_lea.vmem [#allocation3], 26
    %v928 = vld [vmem:[%s927] sm:$0x3]
    %929 = vmatprep.subr.bf16.mxu0 0
    %930 = vmatpush1.bf16.msra.mxu0 %v142
    %931 = vmatprep.subr.bf16.mxu0 0
    %932 = vmatpush1.bf16.msra.mxu0 %v143
    %933 = vmatprep.subr.bf16.mxu0 0
    %934 = vmatpush1.bf16.msra.mxu0 0
    %935 = vmatprep.subr.bf16.mxu0 0
    %936 = vmatpush1.bf16.msra.mxu0 0
    %937 = vmatprep.subr.bf16.mxu0 0
    %938 = vmatpush1.bf16.msra.mxu0 0
    %939 = vmatprep.subr.bf16.mxu0 0
    %940 = vmatpush1.bf16.msra.mxu0 0
    %941 = vmatprep.subr.bf16.mxu0 0
    %942 = vmatpush1.bf16.msra.mxu0 0
    %943 = vmatprep.subr.bf16.mxu0 0
    %944 = vmatpush1.bf16.msra.mxu0 0
    %945 = vmatprep.subr.bf16.mxu0 0
    %946 = vmatpush1.bf16.msra.mxu0 0
    %947 = vmatprep.subr.bf16.mxu0 0
    %948 = vmatpush1.bf16.msra.mxu0 0
    %949 = vmatprep.subr.bf16.mxu0 0
    %950 = vmatpush1.bf16.msra.mxu0 0
    %951 = vmatprep.subr.bf16.mxu0 0
    %952 = vmatpush1.bf16.msra.mxu0 0
    %953 = vmatprep.subr.bf16.mxu0 0
    %954 = vmatpush1.bf16.msra.mxu0 0
    %955 = vmatprep.subr.bf16.mxu0 0
    %956 = vmatpush1.bf16.msra.mxu0 0
    %957 = vmatprep.subr.bf16.mxu0 0
    %958 = vmatpush1.bf16.msra.mxu0 0
    %959 = vmatprep.subr.bf16.mxu0 0
    %960 = vmatpush1.bf16.msra.mxu0 0
    %961 = vmatprep.mubr.bf16.mxu0 0
    %962 = vmatmul.mubr.bf16.gmra.mrb[0].mxu0 %v884
    %v963 = vpop.f32.mrb[0].mxu0
    %v964 = vadd.f32 0.0, %v963
    %v965 = vpop.f32.mrb[0].mxu0
    %v966 = vpop.f32.mrb[0].mxu0
    %v967 = vpop.f32.mrb[0].mxu0
    %968 = vdwg.mxu0
    %v969 = vadd.f32 %v928, %v964
    %970 = vmatprep.subr.bf16.mxu0 0
    %971 = vmatpush1.bf16.msra.mxu0 %v201
    %972 = vmatprep.subr.bf16.mxu0 0
    %973 = vmatpush1.bf16.msra.mxu0 %v202
    %974 = vmatprep.subr.bf16.mxu0 0
    %975 = vmatpush1.bf16.msra.mxu0 0
    %976 = vmatprep.subr.bf16.mxu0 0
    %977 = vmatpush1.bf16.msra.mxu0 0
    %978 = vmatprep.subr.bf16.mxu0 0
    %979 = vmatpush1.bf16.msra.mxu0 0
    %980 = vmatprep.subr.bf16.mxu0 0
    %981 = vmatpush1.bf16.msra.mxu0 0
    %982 = vmatprep.subr.bf16.mxu0 0
    %983 = vmatpush1.bf16.msra.mxu0 0
    %984 = vmatprep.subr.bf16.mxu0 0
    %985 = vmatpush1.bf16.msra.mxu0 0
    %986 = vmatprep.subr.bf16.mxu0 0
    %987 = vmatpush1.bf16.msra.mxu0 0
    %988 = vmatprep.subr.bf16.mxu0 0
    %989 = vmatpush1.bf16.msra.mxu0 0
    %990 = vmatprep.subr.bf16.mxu0 0
    %991 = vmatpush1.bf16.msra.mxu0 0
    %992 = vmatprep.subr.bf16.mxu0 0
    %993 = vmatpush1.bf16.msra.mxu0 0
    %994 = vmatprep.subr.bf16.mxu0 0
    %995 = vmatpush1.bf16.msra.mxu0 0
    %996 = vmatprep.subr.bf16.mxu0 0
    %997 = vmatpush1.bf16.msra.mxu0 0
    %998 = vmatprep.subr.bf16.mxu0 0
    %999 = vmatpush1.bf16.msra.mxu0 0
    %1000 = vmatprep.subr.bf16.mxu0 0
    %1001 = vmatpush1.bf16.msra.mxu0 0
    %1002 = vmatprep.mubr.bf16.mxu0 0
    %1003 = vmatmul.mubr.bf16.gmra.mrb[0].mxu0 %v884
    %v1004 = vpop.f32.mrb[0].mxu0
    %v1005 = vadd.f32 %v191, %v1004
    %v1006 = vpop.f32.mrb[0].mxu0
    %v1007 = vpop.f32.mrb[0].mxu0
    %v1008 = vpop.f32.mrb[0].mxu0
    %1009 = vdwg.mxu0
    %v1010 = vxor.u32 %v926, 2147483648
    %v1011 = vmul.f32 %v1010, 1.442695
    %v1012 = vpow.pop %v1011
    %v1013 = vadd.f32 %v1012, 1.0
    %v1014 = vrcp.pop %v1013
    %v1015 = vmul.f32 1.0, %v1014
    %v1016 = vxor.u32 %v969, 2147483648
    %v1017 = vmul.f32 %v1016, 1.442695
    %v1018 = vpow.pop %v1017
    %v1019 = vadd.f32 %v1018, 1.0
    %v1020 = vrcp.pop %v1019
    %v1021 = vmul.f32 1.0, %v1020
    %s1022 = scalar_lea.vmem [#allocation3], 42
    %v1023 = vld [vmem:[%s1022] sm:$0x3]
    %v1024 = vmul.f32 %v1015, %v1005
    %v1025 = vadd.f32 %v1023, %v1024
    %v1026 = vtanh.pop %v1025
    %v1027 = vsub.f32 1.0, %v1021
    %v1028 = vmul.f32 %v1027, %v1026
    %v1029 = vmul.f32 %v1021, %v877
    %v1030 = vadd.f32 %v1028, %v1029
    %s1031 = scalar_lea.vmem [#allocation8], 10
    %1032 = vst.msk [vmem:[%s1031] sm:$0x3] %vm266, %v1030
    %v1033 = vpack.c.bf16 %v1030, %v1030
    %s1034 = scalar_lea.vmem [#allocation3], 12
    %v1035 = vld [vmem:[%s1034] sm:$0x3]
    %v1037 = vsel %vm87, %v1033, 0
    %1039 = vmatprep.subr.bf16.mxu0 0
    %1040 = vmatpush1.bf16.msra.mxu0 %v83
    %1041 = vmatprep.subr.bf16.mxu0 0
    %1042 = vmatpush1.bf16.msra.mxu0 %v84
    %1043 = vmatprep.subr.bf16.mxu0 0
    %1044 = vmatpush1.bf16.msra.mxu0 0
    %1045 = vmatprep.subr.bf16.mxu0 0
    %1046 = vmatpush1.bf16.msra.mxu0 0
    %1047 = vmatprep.subr.bf16.mxu0 0
    %1048 = vmatpush1.bf16.msra.mxu0 0
    %1049 = vmatprep.subr.bf16.mxu0 0
    %1050 = vmatpush1.bf16.msra.mxu0 0
    %1051 = vmatprep.subr.bf16.mxu0 0
    %1052 = vmatpush1.bf16.msra.mxu0 0
    %1053 = vmatprep.subr.bf16.mxu0 0
    %1054 = vmatpush1.bf16.msra.mxu0 0
    %1055 = vmatprep.subr.bf16.mxu0 0
    %1056 = vmatpush1.bf16.msra.mxu0 0
    %1057 = vmatprep.subr.bf16.mxu0 0
    %1058 = vmatpush1.bf16.msra.mxu0 0
    %1059 = vmatprep.subr.bf16.mxu0 0
    %1060 = vmatpush1.bf16.msra.mxu0 0
    %1061 = vmatprep.subr.bf16.mxu0 0
    %1062 = vmatpush1.bf16.msra.mxu0 0
    %1063 = vmatprep.subr.bf16.mxu0 0
    %1064 = vmatpush1.bf16.msra.mxu0 0
    %1065 = vmatprep.subr.bf16.mxu0 0
    %1066 = vmatpush1.bf16.msra.mxu0 0
    %1067 = vmatprep.subr.bf16.mxu0 0
    %1068 = vmatpush1.bf16.msra.mxu0 0
    %1069 = vmatprep.subr.bf16.mxu0 0
    %1070 = vmatpush1.bf16.msra.mxu0 0
    %1071 = vmatprep.mubr.bf16.mxu0 0
    %1072 = vmatmul.mubr.bf16.gmra.mrb[0].mxu0 %v1037
    %v1073 = vpop.f32.mrb[0].mxu0
    %v1074 = vadd.f32 0.0, %v1073
    %v1075 = vpop.f32.mrb[0].mxu0
    %v1076 = vpop.f32.mrb[0].mxu0
    %v1077 = vpop.f32.mrb[0].mxu0
    %1078 = vdwg.mxu0
    %v1079 = vadd.f32 %v1035, %v1074
    %s1080 = scalar_lea.vmem [#allocation3], 28
    %v1081 = vld [vmem:[%s1080] sm:$0x3]
    %1082 = vmatprep.subr.bf16.mxu0 0
    %1083 = vmatpush1.bf16.msra.mxu0 %v142
    %1084 = vmatprep.subr.bf16.mxu0 0
    %1085 = vmatpush1.bf16.msra.mxu0 %v143
    %1086 = vmatprep.subr.bf16.mxu0 0
    %1087 = vmatpush1.bf16.msra.mxu0 0
    %1088 = vmatprep.subr.bf16.mxu0 0
    %1089 = vmatpush1.bf16.msra.mxu0 0
    %1090 = vmatprep.subr.bf16.mxu0 0
    %1091 = vmatpush1.bf16.msra.mxu0 0
    %1092 = vmatprep.subr.bf16.mxu0 0
    %1093 = vmatpush1.bf16.msra.mxu0 0
    %1094 = vmatprep.subr.bf16.mxu0 0
    %1095 = vmatpush1.bf16.msra.mxu0 0
    %1096 = vmatprep.subr.bf16.mxu0 0
    %1097 = vmatpush1.bf16.msra.mxu0 0
    %1098 = vmatprep.subr.bf16.mxu0 0
    %1099 = vmatpush1.bf16.msra.mxu0 0
    %1100 = vmatprep.subr.bf16.mxu0 0
    %1101 = vmatpush1.bf16.msra.mxu0 0
    %1102 = vmatprep.subr.bf16.mxu0 0
    %1103 = vmatpush1.bf16.msra.mxu0 0
    %1104 = vmatprep.subr.bf16.mxu0 0
    %1105 = vmatpush1.bf16.msra.mxu0 0
    %1106 = vmatprep.subr.bf16.mxu0 0
    %1107 = vmatpush1.bf16.msra.mxu0 0
    %1108 = vmatprep.subr.bf16.mxu0 0
    %1109 = vmatpush1.bf16.msra.mxu0 0
    %1110 = vmatprep.subr.bf16.mxu0 0
    %1111 = vmatpush1.bf16.msra.mxu0 0
    %1112 = vmatprep.subr.bf16.mxu0 0
    %1113 = vmatpush1.bf16.msra.mxu0 0
    %1114 = vmatprep.mubr.bf16.mxu0 0
    %1115 = vmatmul.mubr.bf16.gmra.mrb[0].mxu0 %v1037
    %v1116 = vpop.f32.mrb[0].mxu0
    %v1117 = vadd.f32 0.0, %v1116
    %v1118 = vpop.f32.mrb[0].mxu0
    %v1119 = vpop.f32.mrb[0].mxu0
    %v1120 = vpop.f32.mrb[0].mxu0
    %1121 = vdwg.mxu0
    %v1122 = vadd.f32 %v1081, %v1117
    %1123 = vmatprep.subr.bf16.mxu0 0
    %1124 = vmatpush1.bf16.msra.mxu0 %v201
    %1125 = vmatprep.subr.bf16.mxu0 0
    %1126 = vmatpush1.bf16.msra.mxu0 %v202
    %1127 = vmatprep.subr.bf16.mxu0 0
    %1128 = vmatpush1.bf16.msra.mxu0 0
    %1129 = vmatprep.subr.bf16.mxu0 0
    %1130 = vmatpush1.bf16.msra.mxu0 0
    %1131 = vmatprep.subr.bf16.mxu0 0
    %1132 = vmatpush1.bf16.msra.mxu0 0
    %1133 = vmatprep.subr.bf16.mxu0 0
    %1134 = vmatpush1.bf16.msra.mxu0 0
    %1135 = vmatprep.subr.bf16.mxu0 0
    %1136 = vmatpush1.bf16.msra.mxu0 0
    %1137 = vmatprep.subr.bf16.mxu0 0
    %1138 = vmatpush1.bf16.msra.mxu0 0
    %1139 = vmatprep.subr.bf16.mxu0 0
    %1140 = vmatpush1.bf16.msra.mxu0 0
    %1141 = vmatprep.subr.bf16.mxu0 0
    %1142 = vmatpush1.bf16.msra.mxu0 0
    %1143 = vmatprep.subr.bf16.mxu0 0
    %1144 = vmatpush1.bf16.msra.mxu0 0
    %1145 = vmatprep.subr.bf16.mxu0 0
    %1146 = vmatpush1.bf16.msra.mxu0 0
    %1147 = vmatprep.subr.bf16.mxu0 0
    %1148 = vmatpush1.bf16.msra.mxu0 0
    %1149 = vmatprep.subr.bf16.mxu0 0
    %1150 = vmatpush1.bf16.msra.mxu0 0
    %1151 = vmatprep.subr.bf16.mxu0 0
    %1152 = vmatpush1.bf16.msra.mxu0 0
    %1153 = vmatprep.subr.bf16.mxu0 0
    %1154 = vmatpush1.bf16.msra.mxu0 0
    %1155 = vmatprep.mubr.bf16.mxu0 0
    %1156 = vmatmul.mubr.bf16.gmra.mrb[0].mxu0 %v1037
    %v1157 = vpop.f32.mrb[0].mxu0
    %v1158 = vadd.f32 %v191, %v1157
    %v1159 = vpop.f32.mrb[0].mxu0
    %v1160 = vpop.f32.mrb[0].mxu0
    %v1161 = vpop.f32.mrb[0].mxu0
    %1162 = vdwg.mxu0
    %v1163 = vxor.u32 %v1079, 2147483648
    %v1164 = vmul.f32 %v1163, 1.442695
    %v1165 = vpow.pop %v1164
    %v1166 = vadd.f32 %v1165, 1.0
    %v1167 = vrcp.pop %v1166
    %v1168 = vmul.f32 1.0, %v1167
    %v1169 = vxor.u32 %v1122, 2147483648
    %v1170 = vmul.f32 %v1169, 1.442695
    %v1171 = vpow.pop %v1170
    %v1172 = vadd.f32 %v1171, 1.0
    %v1173 = vrcp.pop %v1172
    %v1174 = vmul.f32 1.0, %v1173
    %s1175 = scalar_lea.vmem [#allocation3], 44
    %v1176 = vld [vmem:[%s1175] sm:$0x3]
    %v1177 = vmul.f32 %v1168, %v1158
    %v1178 = vadd.f32 %v1176, %v1177
    %v1179 = vtanh.pop %v1178
    %v1180 = vsub.f32 1.0, %v1174
    %v1181 = vmul.f32 %v1180, %v1179
    %v1182 = vmul.f32 %v1174, %v1030
    %v1183 = vadd.f32 %v1181, %v1182
    %s1184 = scalar_lea.vmem [#allocation8], 12
    %1185 = vst.msk [vmem:[%s1184] sm:$0x3] %vm266, %v1183
    %v1186 = vpack.c.bf16 %v1183, %v1183
    %s1187 = scalar_lea.vmem [#allocation3], 14
    %v1188 = vld [vmem:[%s1187] sm:$0x3]
    %v1190 = vsel %vm87, %v1186, 0
    %1192 = vmatprep.subr.bf16.mxu0 0
    %1193 = vmatpush1.bf16.msra.mxu0 %v83
    %1194 = vmatprep.subr.bf16.mxu0 0
    %1195 = vmatpush1.bf16.msra.mxu0 %v84
    %1196 = vmatprep.subr.bf16.mxu0 0
    %1197 = vmatpush1.bf16.msra.mxu0 0
    %1198 = vmatprep.subr.bf16.mxu0 0
    %1199 = vmatpush1.bf16.msra.mxu0 0
    %1200 = vmatprep.subr.bf16.mxu0 0
    %1201 = vmatpush1.bf16.msra.mxu0 0
    %1202 = vmatprep.subr.bf16.mxu0 0
    %1203 = vmatpush1.bf16.msra.mxu0 0
    %1204 = vmatprep.subr.bf16.mxu0 0
    %1205 = vmatpush1.bf16.msra.mxu0 0
    %1206 = vmatprep.subr.bf16.mxu0 0
    %1207 = vmatpush1.bf16.msra.mxu0 0
    %1208 = vmatprep.subr.bf16.mxu0 0
    %1209 = vmatpush1.bf16.msra.mxu0 0
    %1210 = vmatprep.subr.bf16.mxu0 0
    %1211 = vmatpush1.bf16.msra.mxu0 0
    %1212 = vmatprep.subr.bf16.mxu0 0
    %1213 = vmatpush1.bf16.msra.mxu0 0
    %1214 = vmatprep.subr.bf16.mxu0 0
    %1215 = vmatpush1.bf16.msra.mxu0 0
    %1216 = vmatprep.subr.bf16.mxu0 0
    %1217 = vmatpush1.bf16.msra.mxu0 0
    %1218 = vmatprep.subr.bf16.mxu0 0
    %1219 = vmatpush1.bf16.msra.mxu0 0
    %1220 = vmatprep.subr.bf16.mxu0 0
    %1221 = vmatpush1.bf16.msra.mxu0 0
    %1222 = vmatprep.subr.bf16.mxu0 0
    %1223 = vmatpush1.bf16.msra.mxu0 0
    %1224 = vmatprep.mubr.bf16.mxu0 0
    %1225 = vmatmul.mubr.bf16.gmra.mrb[0].mxu0 %v1190
    %v1226 = vpop.f32.mrb[0].mxu0
    %v1227 = vadd.f32 0.0, %v1226
    %v1228 = vpop.f32.mrb[0].mxu0
    %v1229 = vpop.f32.mrb[0].mxu0
    %v1230 = vpop.f32.mrb[0].mxu0
    %1231 = vdwg.mxu0
    %v1232 = vadd.f32 %v1188, %v1227
    %s1233 = scalar_lea.vmem [#allocation3], 30
    %v1234 = vld [vmem:[%s1233] sm:$0x3]
    %1235 = vmatprep.subr.bf16.mxu0 0
    %1236 = vmatpush1.bf16.msra.mxu0 %v142
    %1237 = vmatprep.subr.bf16.mxu0 0
    %1238 = vmatpush1.bf16.msra.mxu0 %v143
    %1239 = vmatprep.subr.bf16.mxu0 0
    %1240 = vmatpush1.bf16.msra.mxu0 0
    %1241 = vmatprep.subr.bf16.mxu0 0
    %1242 = vmatpush1.bf16.msra.mxu0 0
    %1243 = vmatprep.subr.bf16.mxu0 0
    %1244 = vmatpush1.bf16.msra.mxu0 0
    %1245 = vmatprep.subr.bf16.mxu0 0
    %1246 = vmatpush1.bf16.msra.mxu0 0
    %1247 = vmatprep.subr.bf16.mxu0 0
    %1248 = vmatpush1.bf16.msra.mxu0 0
    %1249 = vmatprep.subr.bf16.mxu0 0
    %1250 = vmatpush1.bf16.msra.mxu0 0
    %1251 = vmatprep.subr.bf16.mxu0 0
    %1252 = vmatpush1.bf16.msra.mxu0 0
    %1253 = vmatprep.subr.bf16.mxu0 0
    %1254 = vmatpush1.bf16.msra.mxu0 0
    %1255 = vmatprep.subr.bf16.mxu0 0
    %1256 = vmatpush1.bf16.msra.mxu0 0
    %1257 = vmatprep.subr.bf16.mxu0 0
    %1258 = vmatpush1.bf16.msra.mxu0 0
    %1259 = vmatprep.subr.bf16.mxu0 0
    %1260 = vmatpush1.bf16.msra.mxu0 0
    %1261 = vmatprep.subr.bf16.mxu0 0
    %1262 = vmatpush1.bf16.msra.mxu0 0
    %1263 = vmatprep.subr.bf16.mxu0 0
    %1264 = vmatpush1.bf16.msra.mxu0 0
    %1265 = vmatprep.subr.bf16.mxu0 0
    %1266 = vmatpush1.bf16.msra.mxu0 0
    %1267 = vmatprep.mubr.bf16.mxu0 0
    %1268 = vmatmul.mubr.bf16.gmra.mrb[0].mxu0 %v1190
    %v1269 = vpop.f32.mrb[0].mxu0
    %v1270 = vadd.f32 0.0, %v1269
    %v1271 = vpop.f32.mrb[0].mxu0
    %v1272 = vpop.f32.mrb[0].mxu0
    %v1273 = vpop.f32.mrb[0].mxu0
    %1274 = vdwg.mxu0
    %v1275 = vadd.f32 %v1234, %v1270
    %1276 = vmatprep.subr.bf16.mxu0 0
    %1277 = vmatpush1.bf16.msra.mxu0 %v201
    %1278 = vmatprep.subr.bf16.mxu0 0
    %1279 = vmatpush1.bf16.msra.mxu0 %v202
    %1280 = vmatprep.subr.bf16.mxu0 0
    %1281 = vmatpush1.bf16.msra.mxu0 0
    %1282 = vmatprep.subr.bf16.mxu0 0
    %1283 = vmatpush1.bf16.msra.mxu0 0
    %1284 = vmatprep.subr.bf16.mxu0 0
    %1285 = vmatpush1.bf16.msra.mxu0 0
    %1286 = vmatprep.subr.bf16.mxu0 0
    %1287 = vmatpush1.bf16.msra.mxu0 0
    %1288 = vmatprep.subr.bf16.mxu0 0
    %1289 = vmatpush1.bf16.msra.mxu0 0
    %1290 = vmatprep.subr.bf16.mxu0 0
    %1291 = vmatpush1.bf16.msra.mxu0 0
    %1292 = vmatprep.subr.bf16.mxu0 0
    %1293 = vmatpush1.bf16.msra.mxu0 0
    %1294 = vmatprep.subr.bf16.mxu0 0
    %1295 = vmatpush1.bf16.msra.mxu0 0
    %1296 = vmatprep.subr.bf16.mxu0 0
    %1297 = vmatpush1.bf16.msra.mxu0 0
    %1298 = vmatprep.subr.bf16.mxu0 0
    %1299 = vmatpush1.bf16.msra.mxu0 0
    %1300 = vmatprep.subr.bf16.mxu0 0
    %1301 = vmatpush1.bf16.msra.mxu0 0
    %1302 = vmatprep.subr.bf16.mxu0 0
    %1303 = vmatpush1.bf16.msra.mxu0 0
    %1304 = vmatprep.subr.bf16.mxu0 0
    %1305 = vmatpush1.bf16.msra.mxu0 0
    %1306 = vmatprep.subr.bf16.mxu0 0
    %1307 = vmatpush1.bf16.msra.mxu0 0
    %1308 = vmatprep.mubr.bf16.mxu0 0
    %1309 = vmatmul.mubr.bf16.gmra.mrb[0].mxu0 %v1190
    %v1310 = vpop.f32.mrb[0].mxu0
    %v1311 = vadd.f32 %v191, %v1310
    %v1312 = vpop.f32.mrb[0].mxu0
    %v1313 = vpop.f32.mrb[0].mxu0
    %v1314 = vpop.f32.mrb[0].mxu0
    %1315 = vdwg.mxu0
    %v1316 = vxor.u32 %v1232, 2147483648
    %v1317 = vmul.f32 %v1316, 1.442695
    %v1318 = vpow.pop %v1317
    %v1319 = vadd.f32 %v1318, 1.0
    %v1320 = vrcp.pop %v1319
    %v1321 = vmul.f32 1.0, %v1320
    %v1322 = vxor.u32 %v1275, 2147483648
    %v1323 = vmul.f32 %v1322, 1.442695
    %v1324 = vpow.pop %v1323
    %v1325 = vadd.f32 %v1324, 1.0
    %v1326 = vrcp.pop %v1325
    %v1327 = vmul.f32 1.0, %v1326
    %s1328 = scalar_lea.vmem [#allocation3], 46
    %v1329 = vld [vmem:[%s1328] sm:$0x3]
    %v1330 = vmul.f32 %v1321, %v1311
    %v1331 = vadd.f32 %v1329, %v1330
    %v1332 = vtanh.pop %v1331
    %v1333 = vsub.f32 1.0, %v1327
    %v1334 = vmul.f32 %v1333, %v1332
    %v1335 = vmul.f32 %v1327, %v1183
    %v1336 = vadd.f32 %v1334, %v1335
    %s1337 = scalar_lea.vmem [#allocation8], 14
    %1338 = vst.msk [vmem:[%s1337] sm:$0x3] %vm266, %v1336
    %1339 = vst.msk [vmem:[#allocation2] sm:$0x3] %vm266, %v1336
    // Predicated region
    $region30: #{tpu_custom_call.1} parent=1 // pred_check
      %p1340 = pneg %p50
    $region31: #{tpu_custom_call.1} parent=1 // pred_check_branch
      %1342 = sbr.rel (%p1340) target = $region33
    $region32: #{tpu_custom_call.1} parent=1 // pred_region
      %1343 = vst.msk [vmem:[#allocation9] sm:$0x3] %vm266, %v1336
    $region33: #{tpu_custom_call.1} parent=1 // pred_fallthru
      _
    // Predicated region
    $region34: #{tpu_custom_call.1} parent=1 // pred_check
      _
    $region35: #{tpu_custom_call.1} parent=1 // pred_check_branch
      %1345 = sbr.rel (0) target = $region37
    $region36: #{tpu_custom_call.1} parent=1 // pred_region
      %s1347 = ssub.s32 256, 256
      %1348 = vsyncadd [#allocation5], %s1347
      %s1349 = sshll.u32 [#allocation8], 4
      %s1350 = int_to_ptr.vmem [resolvable:$true] %s1349
      %1355 = dma.vmem_to_hbm [thread:$0]  %s1350, 256, %s4, [#allocation5], 32, 32, 2
    $region37: #{tpu_custom_call.1} parent=1 // pred_fallthru
      _
    // Predicated region
    $region38: #{tpu_custom_call.1} parent=1 // pred_check
      _
    $region39: #{tpu_custom_call.1} parent=1 // pred_check_branch
      %1357 = sbr.rel (0) target = $region41
    $region40: #{tpu_custom_call.1} parent=1 // pred_region
      %s1359 = ssub.s32 32, 32
      %1360 = vsyncadd [#allocation10], %s1359
      %s1362 = sshll.u32 [#allocation9], 4
      %s1363 = int_to_ptr.vmem [resolvable:$true] %s1362
      %1365 = dma.vmem_to_hbm [thread:$0]  %s1363, 32, %s5, [#allocation10]
    $region41: #{tpu_custom_call.1} parent=1 // pred_fallthru
      _
    // Predicated region
    $region42: #{tpu_custom_call.1} parent=1 // pred_check
      _
    $region43: #{tpu_custom_call.1} parent=1 // pred_check_branch
      %1367 = sbr.rel (0) target = $region45
    $region44: #{tpu_custom_call.1} parent=1 // pred_region
      %1368 = dma.done [#allocation5], 256
    $region45: #{tpu_custom_call.1} parent=1 // pred_fallthru
      _
    // Predicated region
    $region46: #{tpu_custom_call.1} parent=1 // pred_check
      _
    $region47: #{tpu_custom_call.1} parent=1 // pred_check_branch
      %1370 = sbr.rel (0) target = $region49
    $region48: #{tpu_custom_call.1} parent=1 // pred_region
      %1371 = dma.done [#allocation10], 32
    $region49: #{tpu_custom_call.1} parent=1 // pred_fallthru
      _
    %1372 = vsyncpa [#allocation4], 1
    %1373 = vsyncpa [#allocation7], 1
    %1374 = vsyncpa [#allocation5], 1
    %1375 = vsyncpa [#allocation10], 1

</llo_original>
